<compile_context>
chip_gen: v7x
topology: tpu7x:2x2x1
jax: 0.10.0
libtpu: 0.0.40
codegen_flags: <defaults>
</compile_context>

<pallas_src>
import functools

import numpy as np
import jax
import jax.numpy as jnp
from jax.experimental import pallas as pl
from jax.experimental.pallas import tpu as pltpu


# ----------------------------------------------------------------------------
# q_rsqrt: faithful numpy port of the module's fast inverse square root.
# ----------------------------------------------------------------------------
def q_rsqrt(x):
    y = np.asarray((x,), dtype=np.float32)
    x2 = y * 0.5
    i = y.view(np.int32)
    i = np.right_shift(i, 1)
    i = (np.int32(1597463007) - i).astype(np.int32)
    y = i.view(np.float32)
    y = y * (np.float32(1.5) - x2 * y * y)
    return float(y[0])


# ----------------------------------------------------------------------------
# Kernel: one block of `seqs_per_block` sequences per grid step.
# ----------------------------------------------------------------------------
def _mhsa_kernel(x_ref, wqkv_ref, bqkv_ref, wo_ref, o_ref, qkv_ref, ctx_ref,
                 *, seqs_per_block, tgt_len, n_heads, head_dim, att_dim,
                 scaling, compute_dtype):
    f32 = jnp.float32

    # Fused Q/K/V projection over ALL rows of the block: one MXU matmul with
    # M = seqs_per_block*T rows, fp32 accumulation, one bias add, one cast.
    x = x_ref[...]                                           # (rows, dim)
    qkv = (jnp.dot(x, wqkv_ref[...], preferred_element_type=f32)
           + bqkv_ref[...].astype(f32))
    qkv_ref[...] = qkv.astype(compute_dtype)                 # (rows, 3*att_dim)

    scale = jnp.asarray(scaling, f32)

    # Per-(sequence, head) attention.  b/h are Python ints -> static ref
    # slices (no value-level masked-select relayouts, no concatenate).
    for b in range(seqs_per_block):
        r0 = b * tgt_len
        r1 = r0 + tgt_len
        for h in range(n_heads):
            c0 = h * head_dim
            c1 = c0 + head_dim
            qh = qkv_ref[r0:r1, 0 * att_dim + c0:0 * att_dim + c1]
            kh = qkv_ref[r0:r1, 1 * att_dim + c0:1 * att_dim + c1]
            vh = qkv_ref[r0:r1, 2 * att_dim + c0:2 * att_dim + c1]

            # scores = (q @ k^T) * scaling   (fp32, scaling applied after the
            # matmul exactly as the module does).
            s = jax.lax.dot_general(
                qh, kh, (((1,), (1,)), ((), ())),
                preferred_element_type=f32) * scale           # (T, T)

            # TODO(synk): SoftmaxFastExp's bit-twiddled fast-exp source was
            # not provided; a numerically-stable exact softmax is used.
            s = s - jnp.max(s, axis=-1, keepdims=True)
            p = jnp.exp(s)
            p = p * pl.reciprocal(jnp.sum(p, axis=-1, keepdims=True),
                                  approx=True)
            p = p.astype(compute_dtype)                       # module's cast

            # context = P @ V, written straight into the ctx scratch slab.
            ctx_ref[r0:r1, c0:c1] = jnp.dot(
                p, vh, preferred_element_type=f32).astype(compute_dtype)

    # Single output projection over the whole block; wo is lane-padded to a
    # 128-multiple so this store is unmasked / lane-dense.
    o_ref[...] = jnp.dot(ctx_ref[...], wo_ref[...],
                         preferred_element_type=f32).astype(o_ref.dtype)


# ----------------------------------------------------------------------------
# Wrapper.
# ----------------------------------------------------------------------------
def _default_num_blocks(batch):
    """1 block on single-TC chips (v5e/v6e); 2 parallel blocks on v7x."""
    try:
        kind = jax.devices()[0].device_kind.lower()
    except Exception:  # pragma: no cover - defensive
        kind = ""
    n_tc = 2 if "v7" in kind else 1
    nb = min(n_tc, batch)
    while nb > 1 and batch % nb:
        nb -= 1
    return max(nb, 1)


def mhsa_forward(x, wq, bq, wk, bk, wv, bv, wo, *, n_heads, scaling,
                 num_batch_blocks=None):
    squeeze = (x.ndim == 2)
    if squeeze:
        x = x[None]                                          # (1, T, dim)
    B, T, dim = x.shape
    att_dim = wq.shape[1]
    head_dim = att_dim // n_heads
    compute_dtype = x.dtype

    nb = _default_num_blocks(B) if num_batch_blocks is None else num_batch_blocks
    assert B % nb == 0
    spb = B // nb                                            # sequences / block
    rows = spb * T                                           # rows / block

    # Lane-dense output: pad wo's output dim up to a multiple of 128.
    padded_dim = ((dim + 127) // 128) * 128
    wo_p = wo if padded_dim == dim else jnp.pad(
        wo, ((0, 0), (0, padded_dim - dim)))

    # Fuse the three projections into one weight / one bias.
    wqkv = jnp.concatenate([wq, wk, wv], axis=1)             # (dim, 3*att_dim)
    bqkv = jnp.concatenate([bq, bk, bv], axis=1)             # (1, 3*att_dim)

    x_blk = x.reshape(nb, rows, dim)

    kernel = functools.partial(
        _mhsa_kernel,
        seqs_per_block=spb, tgt_len=T, n_heads=n_heads, head_dim=head_dim,
        att_dim=att_dim, scaling=float(scaling), compute_dtype=compute_dtype)

    out = pl.pallas_call(
        kernel,
        out_shape=jax.ShapeDtypeStruct((nb, rows, padded_dim), compute_dtype),
        grid=(nb,),
        in_specs=[
            pl.BlockSpec((pl.Squeezed(), rows, dim), lambda b: (b, 0, 0)),   # x
            pl.BlockSpec((dim, 3 * att_dim), lambda b: (0, 0)),   # wqkv (resident)
            pl.BlockSpec((1, 3 * att_dim), lambda b: (0, 0)),     # bqkv (resident)
            pl.BlockSpec((att_dim, padded_dim), lambda b: (0, 0)),  # wo  (resident)
        ],
        out_specs=pl.BlockSpec((pl.Squeezed(), rows, padded_dim),
                               lambda b: (b, 0, 0)),
        scratch_shapes=[
            pltpu.VMEM((rows, 3 * att_dim), compute_dtype),   # fused qkv slab
            pltpu.VMEM((rows, att_dim), compute_dtype),       # per-head ctx slab
        ],
        compiler_params=pltpu.CompilerParams(
            dimension_semantics=("parallel",)),
    )(x_blk, wqkv, bqkv, wo_p)

    out = out.reshape(B, T, padded_dim)[..., :dim]
    return out[0] if squeeze else out


# ----------------------------------------------------------------------------
# Pure-JAX reference (same math) for a sanity check.
# ----------------------------------------------------------------------------
def mhsa_reference(x, wq, bq, wk, bk, wv, bv, wo, *, n_heads, scaling):
    if x.ndim == 2:
        x = x[None]
    B, T, dim = x.shape
    att_dim = wq.shape[1]
    hd = att_dim // n_heads
    cd = x.dtype
    f32 = jnp.float32

    q = (jnp.einsum("btd,de->bte", x, wq, preferred_element_type=f32)
         + bq.astype(f32)).astype(cd)
    k = (jnp.einsum("btd,de->bte", x, wk, preferred_element_type=f32)
         + bk.astype(f32)).astype(cd)
    v = (jnp.einsum("btd,de->bte", x, wv, preferred_element_type=f32)
         + bv.astype(f32)).astype(cd)

    q = q.reshape(B, T, n_heads, hd)
    k = k.reshape(B, T, n_heads, hd)
    v = v.reshape(B, T, n_heads, hd)

    s = jnp.einsum("bqhd,bkhd->bhqk", q, k,
                   preferred_element_type=f32) * jnp.float32(scaling)
    s = s - jnp.max(s, axis=-1, keepdims=True)
    p = jnp.exp(s)
    p = (p / jnp.sum(p, axis=-1, keepdims=True)).astype(cd)

    ctx = jnp.einsum("bhqk,bkhd->bqhd", p, v,
                     preferred_element_type=f32).astype(cd)
    ctx = ctx.reshape(B, T, att_dim)
    return jnp.einsum("bte,ed->btd", ctx, wo,
                      preferred_element_type=f32).astype(cd)


if __name__ == "__main__":
    # Small, module-consistent shapes (bf16_format = 1 branch).
    BATCH = 4
    TGT_LEN = 16
    DIM = 64
    ATT_DIM = 64
    N_HEADS = 2
    HEAD_DIM = ATT_DIM // N_HEADS
    DTYPE = jnp.bfloat16

    # scaling = q_rsqrt(head_dim), cast through bf16 like the module does.
    scaling = float(jnp.asarray(q_rsqrt(HEAD_DIM), jnp.bfloat16))

    key = jax.random.PRNGKey(0)
    kx, kwq, kbq, kwk, kbk, kwv, kbv, kwo = jax.random.split(key, 8)

    x = jax.random.normal(kx, (BATCH, TGT_LEN, DIM), DTYPE)
    # Linear weights stored as (in_features, out_features); biases as (1, out).
    wq = (jax.random.normal(kwq, (DIM, ATT_DIM), jnp.float32) * 0.05).astype(DTYPE)
    bq = (jax.random.normal(kbq, (1, ATT_DIM), jnp.float32) * 0.05).astype(DTYPE)
    wk = (jax.random.normal(kwk, (DIM, ATT_DIM), jnp.float32) * 0.05).astype(DTYPE)
    bk = (jax.random.normal(kbk, (1, ATT_DIM), jnp.float32) * 0.05).astype(DTYPE)
    wv = (jax.random.normal(kwv, (DIM, ATT_DIM), jnp.float32) * 0.05).astype(DTYPE)
    bv = (jax.random.normal(kbv, (1, ATT_DIM), jnp.float32) * 0.05).astype(DTYPE)
    wo = (jax.random.normal(kwo, (ATT_DIM, DIM), jnp.float32) * 0.05).astype(DTYPE)

    out = mhsa_forward(x, wq, bq, wk, bk, wv, bv, wo,
                       n_heads=N_HEADS, scaling=scaling)
    out = jax.block_until_ready(out)

    ref = mhsa_reference(x, wq, bq, wk, bk, wv, bv, wo,
                         n_heads=N_HEADS, scaling=scaling)
    ref = jax.block_until_ready(ref)

    assert out.shape == (BATCH, TGT_LEN, DIM) and out.dtype == DTYPE
    np.testing.assert_allclose(np.asarray(out, np.float32),
                               np.asarray(ref, np.float32),
                               rtol=5e-2, atol=5e-2)

    # Batch-less (module-identical) call path.
    out1 = jax.block_until_ready(
        mhsa_forward(x[0], wq, bq, wk, bk, wv, bv, wo,
                     n_heads=N_HEADS, scaling=scaling))
    np.testing.assert_allclose(np.asarray(out1, np.float32),
                               np.asarray(out[0], np.float32),
                               rtol=5e-2, atol=5e-2)

    # Explicit 2-block path (what a v7x chip would pick automatically).
    out2 = jax.block_until_ready(
        mhsa_forward(x, wq, bq, wk, bk, wv, bv, wo,
                     n_heads=N_HEADS, scaling=scaling, num_batch_blocks=2))
    np.testing.assert_allclose(np.asarray(out2, np.float32),
                               np.asarray(ref, np.float32),
                               rtol=5e-2, atol=5e-2)

    print("KERNEL_OK")
</pallas_src>

<mosaic_0001>
module attributes {stable_mosaic.version = 11 : i64} {
  func.func @_mhsa_kernel(%arg0: i32, %arg1: memref<1x64x64xbf16, #tpu.memory_space<vmem>>, %arg2: memref<64x192xbf16, #tpu.memory_space<vmem>>, %arg3: memref<1x192xbf16, #tpu.memory_space<vmem>>, %arg4: memref<64x128xbf16, #tpu.memory_space<vmem>>, %arg5: memref<1x64x128xbf16, #tpu.memory_space<vmem>>, %arg6: memref<64x192xbf16, #tpu.memory_space<vmem>>, %arg7: memref<64x64xbf16, #tpu.memory_space<vmem>>) attributes {dimension_semantics = [#tpu.dimension_semantics<parallel>], iteration_bounds = array<i64: 1>, scalar_prefetch = 0 : i64, scratch_operands = 2 : i64, tpu.core_type = #tpu.core_type<tc>, window_params = [{transform_indices = @transform_0, window_bounds = array<i64: 1, 64, 64>}, {pipeline_mode = #tpu.pipeline_mode<synchronous>, transform_indices = @transform_1, window_bounds = array<i64: 64, 192>}, {pipeline_mode = #tpu.pipeline_mode<synchronous>, transform_indices = @transform_2, window_bounds = array<i64: 1, 192>}, {pipeline_mode = #tpu.pipeline_mode<synchronous>, transform_indices = @transform_3, window_bounds = array<i64: 64, 128>}, {transform_indices = @transform_4, window_bounds = array<i64: 1, 64, 128>}]} {
    %c0 = arith.constant 0 : index
    %c0_0 = arith.constant 0 : index
    %c0_1 = arith.constant 0 : index
    %0 = vector.load %arg1[%c0, %c0_0, %c0_1] : memref<1x64x64xbf16, #tpu.memory_space<vmem>>, vector<1x64x64xbf16>
    %1 = vector.shape_cast %0 : vector<1x64x64xbf16> to vector<64x64xbf16>
    %c0_2 = arith.constant 0 : index
    %c0_3 = arith.constant 0 : index
    %2 = vector.load %arg2[%c0_2, %c0_3] : memref<64x192xbf16, #tpu.memory_space<vmem>>, vector<64x192xbf16>
    %cst = arith.constant dense<0.000000e+00> : vector<64x192xf32>
    %3 = tpu.matmul %1, %2, %cst {dimension_numbers = #tpu.dot_dimension_numbers<[1], [0], [0], [1], [0, 0, 1, 1], [], []>} : vector<64x64xbf16>, vector<64x192xbf16>, vector<64x192xf32> -> vector<64x192xf32>
    %c0_4 = arith.constant 0 : index
    %c0_5 = arith.constant 0 : index
    %4 = vector.load %arg3[%c0_4, %c0_5] : memref<1x192xbf16, #tpu.memory_space<vmem>>, vector<1x192xbf16>
    %5 = arith.extf %4 : vector<1x192xbf16> to vector<1x192xf32>
    %6 = vector.broadcast %5 : vector<1x192xf32> to vector<64x192xf32>
    %7 = arith.addf %3, %6 : vector<64x192xf32>
    %8 = arith.truncf %7 : vector<64x192xf32> to vector<64x192xbf16>
    %c0_6 = arith.constant 0 : index
    %c0_7 = arith.constant 0 : index
    %9 = vector.load %arg6[%c0_6, %c0_7] : memref<64x192xbf16, #tpu.memory_space<vmem>>, vector<64x192xbf16>
    tpu.vector_store %arg6[%c0_6, %c0_7], %8 {strides = array<i32>} : memref<64x192xbf16, #tpu.memory_space<vmem>>, vector<64x192xbf16>,
    %c0_8 = arith.constant 0 : index
    %c0_9 = arith.constant 0 : index
    %10 = vector.load %arg6[%c0_8, %c0_9] : memref<64x192xbf16, #tpu.memory_space<vmem>>, vector<16x32xbf16>
    %c0_10 = arith.constant 0 : index
    %c64 = arith.constant 64 : index
    %11 = vector.load %arg6[%c0_10, %c64] : memref<64x192xbf16, #tpu.memory_space<vmem>>, vector<16x32xbf16>
    %c0_11 = arith.constant 0 : index
    %c128 = arith.constant 128 : index
    %12 = vector.load %arg6[%c0_11, %c128] : memref<64x192xbf16, #tpu.memory_space<vmem>>, vector<16x32xbf16>
    %cst_12 = arith.constant dense<0.000000e+00> : vector<16x16xf32>
    %13 = tpu.matmul %10, %11, %cst_12 {dimension_numbers = #tpu.dot_dimension_numbers<[1], [1], [0], [0], [0, 0, 1, 0], [], []>} : vector<16x32xbf16>, vector<16x32xbf16>, vector<16x16xf32> -> vector<16x16xf32>
    %cst_13 = arith.constant 0.176757813 : f32
    %14 = vector.broadcast %cst_13 : f32 to vector<16x16xf32>
    %15 = arith.mulf %13, %14 : vector<16x16xf32>
    %cst_14 = arith.constant dense<0xFF800000> : vector<16xf32>
    %16 = vector.multi_reduction <maximumf>, %15, %cst_14 [1] : vector<16x16xf32> to vector<16xf32>
    %17 = vector.shape_cast %16 : vector<16xf32> to vector<16x1xf32>
    %18 = vector.broadcast %17 : vector<16x1xf32> to vector<16x16xf32>
    %19 = arith.subf %15, %18 : vector<16x16xf32>
    %20 = math.exp %19 : vector<16x16xf32>
    %cst_15 = arith.constant dense<0.000000e+00> : vector<16xf32>
    %21 = vector.multi_reduction <add>, %20, %cst_15 [1] : vector<16x16xf32> to vector<16xf32>
    %22 = vector.shape_cast %21 : vector<16xf32> to vector<16x1xf32>
    %23 = tpu.reciprocal %22 {approx = true} : vector<16x1xf32> -> vector<16x1xf32>
    %24 = vector.broadcast %23 : vector<16x1xf32> to vector<16x16xf32>
    %25 = arith.mulf %20, %24 : vector<16x16xf32>
    %26 = arith.truncf %25 : vector<16x16xf32> to vector<16x16xbf16>
    %cst_16 = arith.constant dense<0.000000e+00> : vector<16x32xf32>
    %27 = tpu.matmul %26, %12, %cst_16 {dimension_numbers = #tpu.dot_dimension_numbers<[1], [0], [0], [1], [0, 0, 1, 1], [], []>} : vector<16x16xbf16>, vector<16x32xbf16>, vector<16x32xf32> -> vector<16x32xf32>
    %28 = arith.truncf %27 : vector<16x32xf32> to vector<16x32xbf16>
    %c0_17 = arith.constant 0 : index
    %c0_18 = arith.constant 0 : index
    %29 = vector.load %arg7[%c0_17, %c0_18] : memref<64x64xbf16, #tpu.memory_space<vmem>>, vector<16x32xbf16>
    tpu.vector_store %arg7[%c0_17, %c0_18], %28 {strides = array<i32>} : memref<64x64xbf16, #tpu.memory_space<vmem>>, vector<16x32xbf16>,
    %c0_19 = arith.constant 0 : index
    %c32 = arith.constant 32 : index
    %30 = vector.load %arg6[%c0_19, %c32] : memref<64x192xbf16, #tpu.memory_space<vmem>>, vector<16x32xbf16>
    %c0_20 = arith.constant 0 : index
    %c96 = arith.constant 96 : index
    %31 = vector.load %arg6[%c0_20, %c96] : memref<64x192xbf16, #tpu.memory_space<vmem>>, vector<16x32xbf16>
    %c0_21 = arith.constant 0 : index
    %c160 = arith.constant 160 : index
    %32 = vector.load %arg6[%c0_21, %c160] : memref<64x192xbf16, #tpu.memory_space<vmem>>, vector<16x32xbf16>
    %cst_22 = arith.constant dense<0.000000e+00> : vector<16x16xf32>
    %33 = tpu.matmul %30, %31, %cst_22 {dimension_numbers = #tpu.dot_dimension_numbers<[1], [1], [0], [0], [0, 0, 1, 0], [], []>} : vector<16x32xbf16>, vector<16x32xbf16>, vector<16x16xf32> -> vector<16x16xf32>
    %cst_23 = arith.constant 0.176757813 : f32
    %34 = vector.broadcast %cst_23 : f32 to vector<16x16xf32>
    %35 = arith.mulf %33, %34 : vector<16x16xf32>
    %cst_24 = arith.constant dense<0xFF800000> : vector<16xf32>
    %36 = vector.multi_reduction <maximumf>, %35, %cst_24 [1] : vector<16x16xf32> to vector<16xf32>
    %37 = vector.shape_cast %36 : vector<16xf32> to vector<16x1xf32>
    %38 = vector.broadcast %37 : vector<16x1xf32> to vector<16x16xf32>
    %39 = arith.subf %35, %38 : vector<16x16xf32>
    %40 = math.exp %39 : vector<16x16xf32>
    %cst_25 = arith.constant dense<0.000000e+00> : vector<16xf32>
    %41 = vector.multi_reduction <add>, %40, %cst_25 [1] : vector<16x16xf32> to vector<16xf32>
    %42 = vector.shape_cast %41 : vector<16xf32> to vector<16x1xf32>
    %43 = tpu.reciprocal %42 {approx = true} : vector<16x1xf32> -> vector<16x1xf32>
    %44 = vector.broadcast %43 : vector<16x1xf32> to vector<16x16xf32>
    %45 = arith.mulf %40, %44 : vector<16x16xf32>
    %46 = arith.truncf %45 : vector<16x16xf32> to vector<16x16xbf16>
    %cst_26 = arith.constant dense<0.000000e+00> : vector<16x32xf32>
    %47 = tpu.matmul %46, %32, %cst_26 {dimension_numbers = #tpu.dot_dimension_numbers<[1], [0], [0], [1], [0, 0, 1, 1], [], []>} : vector<16x16xbf16>, vector<16x32xbf16>, vector<16x32xf32> -> vector<16x32xf32>
    %48 = arith.truncf %47 : vector<16x32xf32> to vector<16x32xbf16>
    %c0_27 = arith.constant 0 : index
    %c32_28 = arith.constant 32 : index
    %49 = vector.load %arg7[%c0_27, %c32_28] : memref<64x64xbf16, #tpu.memory_space<vmem>>, vector<16x32xbf16>
    tpu.vector_store %arg7[%c0_27, %c32_28], %48 {strides = array<i32>} : memref<64x64xbf16, #tpu.memory_space<vmem>>, vector<16x32xbf16>,
    %c16 = arith.constant 16 : index
    %c0_29 = arith.constant 0 : index
    %50 = vector.load %arg6[%c16, %c0_29] : memref<64x192xbf16, #tpu.memory_space<vmem>>, vector<16x32xbf16>
    %c16_30 = arith.constant 16 : index
    %c64_31 = arith.constant 64 : index
    %51 = vector.load %arg6[%c16_30, %c64_31] : memref<64x192xbf16, #tpu.memory_space<vmem>>, vector<16x32xbf16>
    %c16_32 = arith.constant 16 : index
    %c128_33 = arith.constant 128 : index
    %52 = vector.load %arg6[%c16_32, %c128_33] : memref<64x192xbf16, #tpu.memory_space<vmem>>, vector<16x32xbf16>
    %cst_34 = arith.constant dense<0.000000e+00> : vector<16x16xf32>
    %53 = tpu.matmul %50, %51, %cst_34 {dimension_numbers = #tpu.dot_dimension_numbers<[1], [1], [0], [0], [0, 0, 1, 0], [], []>} : vector<16x32xbf16>, vector<16x32xbf16>, vector<16x16xf32> -> vector<16x16xf32>
    %cst_35 = arith.constant 0.176757813 : f32
    %54 = vector.broadcast %cst_35 : f32 to vector<16x16xf32>
    %55 = arith.mulf %53, %54 : vector<16x16xf32>
    %cst_36 = arith.constant dense<0xFF800000> : vector<16xf32>
    %56 = vector.multi_reduction <maximumf>, %55, %cst_36 [1] : vector<16x16xf32> to vector<16xf32>
    %57 = vector.shape_cast %56 : vector<16xf32> to vector<16x1xf32>
    %58 = vector.broadcast %57 : vector<16x1xf32> to vector<16x16xf32>
    %59 = arith.subf %55, %58 : vector<16x16xf32>
    %60 = math.exp %59 : vector<16x16xf32>
    %cst_37 = arith.constant dense<0.000000e+00> : vector<16xf32>
    %61 = vector.multi_reduction <add>, %60, %cst_37 [1] : vector<16x16xf32> to vector<16xf32>
    %62 = vector.shape_cast %61 : vector<16xf32> to vector<16x1xf32>
    %63 = tpu.reciprocal %62 {approx = true} : vector<16x1xf32> -> vector<16x1xf32>
    %64 = vector.broadcast %63 : vector<16x1xf32> to vector<16x16xf32>
    %65 = arith.mulf %60, %64 : vector<16x16xf32>
    %66 = arith.truncf %65 : vector<16x16xf32> to vector<16x16xbf16>
    %cst_38 = arith.constant dense<0.000000e+00> : vector<16x32xf32>
    %67 = tpu.matmul %66, %52, %cst_38 {dimension_numbers = #tpu.dot_dimension_numbers<[1], [0], [0], [1], [0, 0, 1, 1], [], []>} : vector<16x16xbf16>, vector<16x32xbf16>, vector<16x32xf32> -> vector<16x32xf32>
    %68 = arith.truncf %67 : vector<16x32xf32> to vector<16x32xbf16>
    %c16_39 = arith.constant 16 : index
    %c0_40 = arith.constant 0 : index
    %69 = vector.load %arg7[%c16_39, %c0_40] : memref<64x64xbf16, #tpu.memory_space<vmem>>, vector<16x32xbf16>
    tpu.vector_store %arg7[%c16_39, %c0_40], %68 {strides = array<i32>} : memref<64x64xbf16, #tpu.memory_space<vmem>>, vector<16x32xbf16>,
    %c16_41 = arith.constant 16 : index
    %c32_42 = arith.constant 32 : index
    %70 = vector.load %arg6[%c16_41, %c32_42] : memref<64x192xbf16, #tpu.memory_space<vmem>>, vector<16x32xbf16>
    %c16_43 = arith.constant 16 : index
    %c96_44 = arith.constant 96 : index
    %71 = vector.load %arg6[%c16_43, %c96_44] : memref<64x192xbf16, #tpu.memory_space<vmem>>, vector<16x32xbf16>
    %c16_45 = arith.constant 16 : index
    %c160_46 = arith.constant 160 : index
    %72 = vector.load %arg6[%c16_45, %c160_46] : memref<64x192xbf16, #tpu.memory_space<vmem>>, vector<16x32xbf16>
    %cst_47 = arith.constant dense<0.000000e+00> : vector<16x16xf32>
    %73 = tpu.matmul %70, %71, %cst_47 {dimension_numbers = #tpu.dot_dimension_numbers<[1], [1], [0], [0], [0, 0, 1, 0], [], []>} : vector<16x32xbf16>, vector<16x32xbf16>, vector<16x16xf32> -> vector<16x16xf32>
    %cst_48 = arith.constant 0.176757813 : f32
    %74 = vector.broadcast %cst_48 : f32 to vector<16x16xf32>
    %75 = arith.mulf %73, %74 : vector<16x16xf32>
    %cst_49 = arith.constant dense<0xFF800000> : vector<16xf32>
    %76 = vector.multi_reduction <maximumf>, %75, %cst_49 [1] : vector<16x16xf32> to vector<16xf32>
    %77 = vector.shape_cast %76 : vector<16xf32> to vector<16x1xf32>
    %78 = vector.broadcast %77 : vector<16x1xf32> to vector<16x16xf32>
    %79 = arith.subf %75, %78 : vector<16x16xf32>
    %80 = math.exp %79 : vector<16x16xf32>
    %cst_50 = arith.constant dense<0.000000e+00> : vector<16xf32>
    %81 = vector.multi_reduction <add>, %80, %cst_50 [1] : vector<16x16xf32> to vector<16xf32>
    %82 = vector.shape_cast %81 : vector<16xf32> to vector<16x1xf32>
    %83 = tpu.reciprocal %82 {approx = true} : vector<16x1xf32> -> vector<16x1xf32>
    %84 = vector.broadcast %83 : vector<16x1xf32> to vector<16x16xf32>
    %85 = arith.mulf %80, %84 : vector<16x16xf32>
    %86 = arith.truncf %85 : vector<16x16xf32> to vector<16x16xbf16>
    %cst_51 = arith.constant dense<0.000000e+00> : vector<16x32xf32>
    %87 = tpu.matmul %86, %72, %cst_51 {dimension_numbers = #tpu.dot_dimension_numbers<[1], [0], [0], [1], [0, 0, 1, 1], [], []>} : vector<16x16xbf16>, vector<16x32xbf16>, vector<16x32xf32> -> vector<16x32xf32>
    %88 = arith.truncf %87 : vector<16x32xf32> to vector<16x32xbf16>
    %c16_52 = arith.constant 16 : index
    %c32_53 = arith.constant 32 : index
    %89 = vector.load %arg7[%c16_52, %c32_53] : memref<64x64xbf16, #tpu.memory_space<vmem>>, vector<16x32xbf16>
    tpu.vector_store %arg7[%c16_52, %c32_53], %88 {strides = array<i32>} : memref<64x64xbf16, #tpu.memory_space<vmem>>, vector<16x32xbf16>,
    %c32_54 = arith.constant 32 : index
    %c0_55 = arith.constant 0 : index
    %90 = vector.load %arg6[%c32_54, %c0_55] : memref<64x192xbf16, #tpu.memory_space<vmem>>, vector<16x32xbf16>
    %c32_56 = arith.constant 32 : index
    %c64_57 = arith.constant 64 : index
    %91 = vector.load %arg6[%c32_56, %c64_57] : memref<64x192xbf16, #tpu.memory_space<vmem>>, vector<16x32xbf16>
    %c32_58 = arith.constant 32 : index
    %c128_59 = arith.constant 128 : index
    %92 = vector.load %arg6[%c32_58, %c128_59] : memref<64x192xbf16, #tpu.memory_space<vmem>>, vector<16x32xbf16>
    %cst_60 = arith.constant dense<0.000000e+00> : vector<16x16xf32>
    %93 = tpu.matmul %90, %91, %cst_60 {dimension_numbers = #tpu.dot_dimension_numbers<[1], [1], [0], [0], [0, 0, 1, 0], [], []>} : vector<16x32xbf16>, vector<16x32xbf16>, vector<16x16xf32> -> vector<16x16xf32>
    %cst_61 = arith.constant 0.176757813 : f32
    %94 = vector.broadcast %cst_61 : f32 to vector<16x16xf32>
    %95 = arith.mulf %93, %94 : vector<16x16xf32>
    %cst_62 = arith.constant dense<0xFF800000> : vector<16xf32>
    %96 = vector.multi_reduction <maximumf>, %95, %cst_62 [1] : vector<16x16xf32> to vector<16xf32>
    %97 = vector.shape_cast %96 : vector<16xf32> to vector<16x1xf32>
    %98 = vector.broadcast %97 : vector<16x1xf32> to vector<16x16xf32>
    %99 = arith.subf %95, %98 : vector<16x16xf32>
    %100 = math.exp %99 : vector<16x16xf32>
    %cst_63 = arith.constant dense<0.000000e+00> : vector<16xf32>
    %101 = vector.multi_reduction <add>, %100, %cst_63 [1] : vector<16x16xf32> to vector<16xf32>
    %102 = vector.shape_cast %101 : vector<16xf32> to vector<16x1xf32>
    %103 = tpu.reciprocal %102 {approx = true} : vector<16x1xf32> -> vector<16x1xf32>
    %104 = vector.broadcast %103 : vector<16x1xf32> to vector<16x16xf32>
    %105 = arith.mulf %100, %104 : vector<16x16xf32>
    %106 = arith.truncf %105 : vector<16x16xf32> to vector<16x16xbf16>
    %cst_64 = arith.constant dense<0.000000e+00> : vector<16x32xf32>
    %107 = tpu.matmul %106, %92, %cst_64 {dimension_numbers = #tpu.dot_dimension_numbers<[1], [0], [0], [1], [0, 0, 1, 1], [], []>} : vector<16x16xbf16>, vector<16x32xbf16>, vector<16x32xf32> -> vector<16x32xf32>
    %108 = arith.truncf %107 : vector<16x32xf32> to vector<16x32xbf16>
    %c32_65 = arith.constant 32 : index
    %c0_66 = arith.constant 0 : index
    %109 = vector.load %arg7[%c32_65, %c0_66] : memref<64x64xbf16, #tpu.memory_space<vmem>>, vector<16x32xbf16>
    tpu.vector_store %arg7[%c32_65, %c0_66], %108 {strides = array<i32>} : memref<64x64xbf16, #tpu.memory_space<vmem>>, vector<16x32xbf16>,
    %c32_67 = arith.constant 32 : index
    %c32_68 = arith.constant 32 : index
    %110 = vector.load %arg6[%c32_67, %c32_68] : memref<64x192xbf16, #tpu.memory_space<vmem>>, vector<16x32xbf16>
    %c32_69 = arith.constant 32 : index
    %c96_70 = arith.constant 96 : index
    %111 = vector.load %arg6[%c32_69, %c96_70] : memref<64x192xbf16, #tpu.memory_space<vmem>>, vector<16x32xbf16>
    %c32_71 = arith.constant 32 : index
    %c160_72 = arith.constant 160 : index
    %112 = vector.load %arg6[%c32_71, %c160_72] : memref<64x192xbf16, #tpu.memory_space<vmem>>, vector<16x32xbf16>
    %cst_73 = arith.constant dense<0.000000e+00> : vector<16x16xf32>
    %113 = tpu.matmul %110, %111, %cst_73 {dimension_numbers = #tpu.dot_dimension_numbers<[1], [1], [0], [0], [0, 0, 1, 0], [], []>} : vector<16x32xbf16>, vector<16x32xbf16>, vector<16x16xf32> -> vector<16x16xf32>
    %cst_74 = arith.constant 0.176757813 : f32
    %114 = vector.broadcast %cst_74 : f32 to vector<16x16xf32>
    %115 = arith.mulf %113, %114 : vector<16x16xf32>
    %cst_75 = arith.constant dense<0xFF800000> : vector<16xf32>
    %116 = vector.multi_reduction <maximumf>, %115, %cst_75 [1] : vector<16x16xf32> to vector<16xf32>
    %117 = vector.shape_cast %116 : vector<16xf32> to vector<16x1xf32>
    %118 = vector.broadcast %117 : vector<16x1xf32> to vector<16x16xf32>
    %119 = arith.subf %115, %118 : vector<16x16xf32>
    %120 = math.exp %119 : vector<16x16xf32>
    %cst_76 = arith.constant dense<0.000000e+00> : vector<16xf32>
    %121 = vector.multi_reduction <add>, %120, %cst_76 [1] : vector<16x16xf32> to vector<16xf32>
    %122 = vector.shape_cast %121 : vector<16xf32> to vector<16x1xf32>
    %123 = tpu.reciprocal %122 {approx = true} : vector<16x1xf32> -> vector<16x1xf32>
    %124 = vector.broadcast %123 : vector<16x1xf32> to vector<16x16xf32>
    %125 = arith.mulf %120, %124 : vector<16x16xf32>
    %126 = arith.truncf %125 : vector<16x16xf32> to vector<16x16xbf16>
    %cst_77 = arith.constant dense<0.000000e+00> : vector<16x32xf32>
    %127 = tpu.matmul %126, %112, %cst_77 {dimension_numbers = #tpu.dot_dimension_numbers<[1], [0], [0], [1], [0, 0, 1, 1], [], []>} : vector<16x16xbf16>, vector<16x32xbf16>, vector<16x32xf32> -> vector<16x32xf32>
    %128 = arith.truncf %127 : vector<16x32xf32> to vector<16x32xbf16>
    %c32_78 = arith.constant 32 : index
    %c32_79 = arith.constant 32 : index
    %129 = vector.load %arg7[%c32_78, %c32_79] : memref<64x64xbf16, #tpu.memory_space<vmem>>, vector<16x32xbf16>
    tpu.vector_store %arg7[%c32_78, %c32_79], %128 {strides = array<i32>} : memref<64x64xbf16, #tpu.memory_space<vmem>>, vector<16x32xbf16>,
    %c48 = arith.constant 48 : index
    %c0_80 = arith.constant 0 : index
    %130 = vector.load %arg6[%c48, %c0_80] : memref<64x192xbf16, #tpu.memory_space<vmem>>, vector<16x32xbf16>
    %c48_81 = arith.constant 48 : index
    %c64_82 = arith.constant 64 : index
    %131 = vector.load %arg6[%c48_81, %c64_82] : memref<64x192xbf16, #tpu.memory_space<vmem>>, vector<16x32xbf16>
    %c48_83 = arith.constant 48 : index
    %c128_84 = arith.constant 128 : index
    %132 = vector.load %arg6[%c48_83, %c128_84] : memref<64x192xbf16, #tpu.memory_space<vmem>>, vector<16x32xbf16>
    %cst_85 = arith.constant dense<0.000000e+00> : vector<16x16xf32>
    %133 = tpu.matmul %130, %131, %cst_85 {dimension_numbers = #tpu.dot_dimension_numbers<[1], [1], [0], [0], [0, 0, 1, 0], [], []>} : vector<16x32xbf16>, vector<16x32xbf16>, vector<16x16xf32> -> vector<16x16xf32>
    %cst_86 = arith.constant 0.176757813 : f32
    %134 = vector.broadcast %cst_86 : f32 to vector<16x16xf32>
    %135 = arith.mulf %133, %134 : vector<16x16xf32>
    %cst_87 = arith.constant dense<0xFF800000> : vector<16xf32>
    %136 = vector.multi_reduction <maximumf>, %135, %cst_87 [1] : vector<16x16xf32> to vector<16xf32>
    %137 = vector.shape_cast %136 : vector<16xf32> to vector<16x1xf32>
    %138 = vector.broadcast %137 : vector<16x1xf32> to vector<16x16xf32>
    %139 = arith.subf %135, %138 : vector<16x16xf32>
    %140 = math.exp %139 : vector<16x16xf32>
    %cst_88 = arith.constant dense<0.000000e+00> : vector<16xf32>
    %141 = vector.multi_reduction <add>, %140, %cst_88 [1] : vector<16x16xf32> to vector<16xf32>
    %142 = vector.shape_cast %141 : vector<16xf32> to vector<16x1xf32>
    %143 = tpu.reciprocal %142 {approx = true} : vector<16x1xf32> -> vector<16x1xf32>
    %144 = vector.broadcast %143 : vector<16x1xf32> to vector<16x16xf32>
    %145 = arith.mulf %140, %144 : vector<16x16xf32>
    %146 = arith.truncf %145 : vector<16x16xf32> to vector<16x16xbf16>
    %cst_89 = arith.constant dense<0.000000e+00> : vector<16x32xf32>
    %147 = tpu.matmul %146, %132, %cst_89 {dimension_numbers = #tpu.dot_dimension_numbers<[1], [0], [0], [1], [0, 0, 1, 1], [], []>} : vector<16x16xbf16>, vector<16x32xbf16>, vector<16x32xf32> -> vector<16x32xf32>
    %148 = arith.truncf %147 : vector<16x32xf32> to vector<16x32xbf16>
    %c48_90 = arith.constant 48 : index
    %c0_91 = arith.constant 0 : index
    %149 = vector.load %arg7[%c48_90, %c0_91] : memref<64x64xbf16, #tpu.memory_space<vmem>>, vector<16x32xbf16>
    tpu.vector_store %arg7[%c48_90, %c0_91], %148 {strides = array<i32>} : memref<64x64xbf16, #tpu.memory_space<vmem>>, vector<16x32xbf16>,
    %c48_92 = arith.constant 48 : index
    %c32_93 = arith.constant 32 : index
    %150 = vector.load %arg6[%c48_92, %c32_93] : memref<64x192xbf16, #tpu.memory_space<vmem>>, vector<16x32xbf16>
    %c48_94 = arith.constant 48 : index
    %c96_95 = arith.constant 96 : index
    %151 = vector.load %arg6[%c48_94, %c96_95] : memref<64x192xbf16, #tpu.memory_space<vmem>>, vector<16x32xbf16>
    %c48_96 = arith.constant 48 : index
    %c160_97 = arith.constant 160 : index
    %152 = vector.load %arg6[%c48_96, %c160_97] : memref<64x192xbf16, #tpu.memory_space<vmem>>, vector<16x32xbf16>
    %cst_98 = arith.constant dense<0.000000e+00> : vector<16x16xf32>
    %153 = tpu.matmul %150, %151, %cst_98 {dimension_numbers = #tpu.dot_dimension_numbers<[1], [1], [0], [0], [0, 0, 1, 0], [], []>} : vector<16x32xbf16>, vector<16x32xbf16>, vector<16x16xf32> -> vector<16x16xf32>
    %cst_99 = arith.constant 0.176757813 : f32
    %154 = vector.broadcast %cst_99 : f32 to vector<16x16xf32>
    %155 = arith.mulf %153, %154 : vector<16x16xf32>
    %cst_100 = arith.constant dense<0xFF800000> : vector<16xf32>
    %156 = vector.multi_reduction <maximumf>, %155, %cst_100 [1] : vector<16x16xf32> to vector<16xf32>
    %157 = vector.shape_cast %156 : vector<16xf32> to vector<16x1xf32>
    %158 = vector.broadcast %157 : vector<16x1xf32> to vector<16x16xf32>
    %159 = arith.subf %155, %158 : vector<16x16xf32>
    %160 = math.exp %159 : vector<16x16xf32>
    %cst_101 = arith.constant dense<0.000000e+00> : vector<16xf32>
    %161 = vector.multi_reduction <add>, %160, %cst_101 [1] : vector<16x16xf32> to vector<16xf32>
    %162 = vector.shape_cast %161 : vector<16xf32> to vector<16x1xf32>
    %163 = tpu.reciprocal %162 {approx = true} : vector<16x1xf32> -> vector<16x1xf32>
    %164 = vector.broadcast %163 : vector<16x1xf32> to vector<16x16xf32>
    %165 = arith.mulf %160, %164 : vector<16x16xf32>
    %166 = arith.truncf %165 : vector<16x16xf32> to vector<16x16xbf16>
    %cst_102 = arith.constant dense<0.000000e+00> : vector<16x32xf32>
    %167 = tpu.matmul %166, %152, %cst_102 {dimension_numbers = #tpu.dot_dimension_numbers<[1], [0], [0], [1], [0, 0, 1, 1], [], []>} : vector<16x16xbf16>, vector<16x32xbf16>, vector<16x32xf32> -> vector<16x32xf32>
    %168 = arith.truncf %167 : vector<16x32xf32> to vector<16x32xbf16>
    %c48_103 = arith.constant 48 : index
    %c32_104 = arith.constant 32 : index
    %169 = vector.load %arg7[%c48_103, %c32_104] : memref<64x64xbf16, #tpu.memory_space<vmem>>, vector<16x32xbf16>
    tpu.vector_store %arg7[%c48_103, %c32_104], %168 {strides = array<i32>} : memref<64x64xbf16, #tpu.memory_space<vmem>>, vector<16x32xbf16>,
    %c0_105 = arith.constant 0 : index
    %c0_106 = arith.constant 0 : index
    %170 = vector.load %arg7[%c0_105, %c0_106] : memref<64x64xbf16, #tpu.memory_space<vmem>>, vector<64x64xbf16>
    %c0_107 = arith.constant 0 : index
    %c0_108 = arith.constant 0 : index
    %171 = vector.load %arg4[%c0_107, %c0_108] : memref<64x128xbf16, #tpu.memory_space<vmem>>, vector<64x128xbf16>
    %cst_109 = arith.constant dense<0.000000e+00> : vector<64x128xf32>
    %172 = tpu.matmul %170, %171, %cst_109 {dimension_numbers = #tpu.dot_dimension_numbers<[1], [0], [0], [1], [0, 0, 1, 1], [], []>} : vector<64x64xbf16>, vector<64x128xbf16>, vector<64x128xf32> -> vector<64x128xf32>
    %173 = arith.truncf %172 : vector<64x128xf32> to vector<64x128xbf16>
    %c0_110 = arith.constant 0 : index
    %c0_111 = arith.constant 0 : index
    %c0_112 = arith.constant 0 : index
    %174 = vector.load %arg5[%c0_110, %c0_111, %c0_112] : memref<1x64x128xbf16, #tpu.memory_space<vmem>>, vector<1x64x128xbf16>
    %175 = vector.shape_cast %174 : vector<1x64x128xbf16> to vector<64x128xbf16>
    %176 = vector.shape_cast %173 : vector<64x128xbf16> to vector<1x64x128xbf16>
    tpu.vector_store %arg5[%c0_110, %c0_111, %c0_112], %176 {strides = array<i32>} : memref<1x64x128xbf16, #tpu.memory_space<vmem>>, vector<1x64x128xbf16>,
    return
  }
  func.func @transform_0(%arg0: i32) -> (i32, i32, i32) {
    %c0_i32 = arith.constant 0 : i32
    %c0_i32_0 = arith.constant 0 : i32
    %c0_i32_1 = arith.constant 0 : i32
    return %arg0, %c0_i32, %c0_i32_0 : i32, i32, i32
  }
  func.func @transform_1(%arg0: i32) -> (i32, i32) {
    %c0_i32 = arith.constant 0 : i32
    %c0_i32_0 = arith.constant 0 : i32
    %c0_i32_1 = arith.constant 0 : i32
    return %c0_i32, %c0_i32_0 : i32, i32
  }
  func.func @transform_2(%arg0: i32) -> (i32, i32) {
    %c0_i32 = arith.constant 0 : i32
    %c0_i32_0 = arith.constant 0 : i32
    %c0_i32_1 = arith.constant 0 : i32
    return %c0_i32, %c0_i32_0 : i32, i32
  }
  func.func @transform_3(%arg0: i32) -> (i32, i32) {
    %c0_i32 = arith.constant 0 : i32
    %c0_i32_0 = arith.constant 0 : i32
    %c0_i32_1 = arith.constant 0 : i32
    return %c0_i32, %c0_i32_0 : i32, i32
  }
  func.func @transform_4(%arg0: i32) -> (i32, i32, i32) {
    %c0_i32 = arith.constant 0 : i32
    %c0_i32_0 = arith.constant 0 : i32
    %c0_i32_1 = arith.constant 0 : i32
    return %arg0, %c0_i32, %c0_i32_0 : i32, i32, i32
  }
}

</mosaic_0001>

<llo_original>
// kernel: tpu_custom_call.1
$region0: #{tpu_custom_call.1}
  #allocation0 [shape = 'u32[]', space=smem, size = 0x4, offset = 0x4, fixed_abs, tag = 'smem constant byte address 0x4 - core index']
  #allocation1 [shape = 'u32[144,128]{1,0:T(1,128)}', space=vmem, size = 0x12000, scoped, tag = 'internal scratch']
  #allocation2 [shape = 'bf16[64,192]{1,0:T(16,128)(2,1)}', space=vmem, size = 0x8000, scoped, tag = 'scratch operand']
  #allocation3 [shape = 'bf16[64,64]{1,0:T(16,128)(2,1)}', space=vmem, size = 0x4000, scoped, tag = 'scratch operand']
  %s0 = inlined_call_operand.hbm [shape: bf16[1,64,64], index: 0, kind: input, shape index: {}]
  %s1 = inlined_call_operand.hbm [shape: bf16[64,192], index: 1, kind: input, shape index: {}]
  %s2 = inlined_call_operand.vmem [shape: bf16[1,192], index: 2, kind: input, shape index: {}]
  %s3 = inlined_call_operand.hbm [shape: bf16[64,128], index: 3, kind: input, shape index: {}]
  %s4 = inlined_call_operand.hbm [shape: bf16[1,64,128], index: 4, kind: output, shape index: {}]
  %s5 = sld [smem:[#allocation0]]
  $region38: #{tpu_custom_call.1} parent=0
    _
  %s7 = ssub.s32 1, %s5
  %s8 = scalar_select 0, %s7, %s5
  $region1: #{tpu_custom_call.1} parent=0
    #allocation4 [shape = 'u8[16384]{0}', space=vmem, size = 0x4000, scoped, tag = 'input window, operand 0, single buffered']
    #allocation5 [shape = 's32[1]{0}', space=sflag, size = 0x4, scoped, tag = 'scoped memory for tpu_custom_call.1']
    #allocation6 [shape = 's32[1]{0}', space=sflag, size = 0x4, scoped, tag = 'scoped memory for tpu_custom_call.1']
    #allocation7 [shape = 'u8[32768]{0}', space=vmem, size = 0x8000, scoped, tag = 'input window, operand 1, single buffered']
    #allocation8 [shape = 's32[1]{0}', space=sflag, size = 0x4, scoped, tag = 'scoped memory for tpu_custom_call.1']
    #allocation9 [shape = 'u8[16384]{0}', space=vmem, size = 0x4000, scoped, tag = 'input window, operand 3, single buffered']
    #allocation10 [shape = 'u8[16384]{0}', space=vmem, size = 0x4000, scoped, tag = 'output window, operand 0, single buffered']
    %9 = vsyncpa [#allocation5], 0
    %10 = vsyncpa [#allocation8], 0
    %11 = vsyncpa [#allocation6], 0
    // Predicated region
    $region2: #{tpu_custom_call.1} parent=1 // pred_check
      _
    $region3: #{tpu_custom_call.1} parent=1 // pred_check_branch
      %13 = sbr.rel (0) target = $region5
    $region4: #{tpu_custom_call.1} parent=1 // pred_region
      %s15 = ssub.s32 512, 512
      %16 = vsyncadd [#allocation5], %s15
      %s17 = sshll.u32 [#allocation4], 4
      %s18 = int_to_ptr.vmem [resolvable:$true] %s17
      %23 = dma.hbm_to_vmem [thread:$0]  %s0, 512, %s18, [#allocation5], 64, 64, 4
    $region5: #{tpu_custom_call.1} parent=1 // pred_fallthru
      _
    // Predicated region
    $region6: #{tpu_custom_call.1} parent=1 // pred_check
      _
    $region7: #{tpu_custom_call.1} parent=1 // pred_check_branch
      %25 = sbr.rel (0) target = $region9
    $region8: #{tpu_custom_call.1} parent=1 // pred_region
      %s27 = ssub.s32 1024, 1024
      %28 = vsyncadd [#allocation8], %s27
      %s29 = sshll.u32 [#allocation7], 4
      %s30 = int_to_ptr.vmem [resolvable:$true] %s29
      %35 = dma.hbm_to_vmem [thread:$0]  %s1, 1024, %s30, [#allocation8], 128, 128, 8
    $region9: #{tpu_custom_call.1} parent=1 // pred_fallthru
      _
    // Predicated region
    $region10: #{tpu_custom_call.1} parent=1 // pred_check
      _
    $region11: #{tpu_custom_call.1} parent=1 // pred_check_branch
      %37 = sbr.rel (0) target = $region13
    $region12: #{tpu_custom_call.1} parent=1 // pred_region
      _
    $region13: #{tpu_custom_call.1} parent=1 // pred_fallthru
      _
    // Predicated region
    $region14: #{tpu_custom_call.1} parent=1 // pred_check
      _
    $region15: #{tpu_custom_call.1} parent=1 // pred_check_branch
      %39 = sbr.rel (0) target = $region17
    $region16: #{tpu_custom_call.1} parent=1 // pred_region
      %s41 = ssub.s32 512, 512
      %42 = vsyncadd [#allocation8], %s41
      %s43 = sshll.u32 [#allocation9], 4
      %s44 = int_to_ptr.vmem [resolvable:$true] %s43
      %49 = dma.hbm_to_vmem [thread:$0]  %s3, 512, %s44, [#allocation8], 64, 64, 4
    $region17: #{tpu_custom_call.1} parent=1 // pred_fallthru
      _
    // Predicated region
    $region18: #{tpu_custom_call.1} parent=1 // pred_check
      _
    $region19: #{tpu_custom_call.1} parent=1 // pred_check_branch
      %51 = sbr.rel (0) target = $region21
    $region20: #{tpu_custom_call.1} parent=1 // pred_region
      %52 = dma.done [#allocation5], 512
    $region21: #{tpu_custom_call.1} parent=1 // pred_fallthru
      _
    // Predicated region
    $region22: #{tpu_custom_call.1} parent=1 // pred_check
      _
    $region23: #{tpu_custom_call.1} parent=1 // pred_check_branch
      %54 = sbr.rel (0) target = $region25
    $region24: #{tpu_custom_call.1} parent=1 // pred_region
      %55 = dma.done [#allocation8], 1024
    $region25: #{tpu_custom_call.1} parent=1 // pred_fallthru
      _
    // Predicated region
    $region26: #{tpu_custom_call.1} parent=1 // pred_check
      _
    $region27: #{tpu_custom_call.1} parent=1 // pred_check_branch
      %57 = sbr.rel (0) target = $region29
    $region28: #{tpu_custom_call.1} parent=1 // pred_region
      %58 = dma.done [#allocation8], 512
    $region29: #{tpu_custom_call.1} parent=1 // pred_fallthru
      _
    %v60 = vld [vmem:[#allocation4] sm:$0xf]
    %v61 = vld [vmem:[#allocation4 + $0x4] sm:$0xf]
    %v62 = vld [vmem:[#allocation4 + $0x8] sm:$0xf]
    %v63 = vld [vmem:[#allocation4 + $0xc] sm:$0xf]
    %v64 = vld [vmem:[#allocation4 + $0x10] sm:$0xf]
    %v65 = vld [vmem:[#allocation4 + $0x14] sm:$0xf]
    %v66 = vld [vmem:[#allocation4 + $0x18] sm:$0xf]
    %v67 = vld [vmem:[#allocation4 + $0x1c] sm:$0xf]
    %v68 = vld [vmem:[#allocation7] sm:$0xff]
    %v69 = vld [vmem:[#allocation7 + $0x8] sm:$0xff]
    %v70 = vld [vmem:[#allocation7 + $0x10] sm:$0xff]
    %v71 = vld [vmem:[#allocation7 + $0x18] sm:$0xff]
    %v72 = vld [vmem:[#allocation7 + $0x20] sm:$0xff]
    %v73 = vld [vmem:[#allocation7 + $0x28] sm:$0xff]
    %v74 = vld [vmem:[#allocation7 + $0x30] sm:$0xff]
    %v75 = vld [vmem:[#allocation7 + $0x38] sm:$0xff]
    %v76 = vld [vmem:[%s2] sm:$0x3]
    %v77 = vunpack.c.l.bf16 %v76
    %v79 = vlaneseq
    %v80 = vshrl.u32 %v79, 7
    %v81 = vsub.s32 0, %v80
    %v82 = vrot.slane %v77, %v81
    %v83 = vlaneseq
    %v84 = vshrl.u32 %v83, 7
    %v85 = vsub.s32 2, %v84
    %v86 = vrot.slane %v77, %v85
    %v89 = vlaneseq
    %v90 = vshrl.u32 %v89, 7
    %v91 = vsub.s32 0, %v90
    %v92 = vrot.slane %v82, %v91
    %v93 = vlaneseq
    %v94 = vshrl.u32 %v93, 7
    %v95 = vsub.s32 0, %v94
    %v96 = vrot.slane %v86, %v95
    %v105 = vunpack.c.l.b16 %v60
    %v106 = vunpack.c.l.b16 %v61
    %v107 = vunpack.c.l.b16 %v62
    %v108 = vunpack.c.l.b16 %v63
    %v109 = vunpack.c.l.b16 %v64
    %v110 = vunpack.c.l.b16 %v65
    %v111 = vunpack.c.l.b16 %v66
    %v112 = vunpack.c.l.b16 %v67
    %v113 = vpack.c.b16 %v106, %v105
    %v114 = vpack.c.b16 %v108, %v107
    %v115 = vpack.c.b16 %v110, %v109
    %v116 = vpack.c.b16 %v112, %v111
    %v125 = vunpack.c.l.b16 %v68
    %v126 = vunpack.c.h.b16 %v68
    %v127 = vunpack.c.l.b16 %v69
    %v128 = vunpack.c.h.b16 %v69
    %v129 = vunpack.c.l.b16 %v70
    %v130 = vunpack.c.h.b16 %v70
    %v131 = vunpack.c.l.b16 %v71
    %v132 = vunpack.c.h.b16 %v71
    %v133 = vunpack.c.l.b16 %v72
    %v134 = vunpack.c.h.b16 %v72
    %v135 = vunpack.c.l.b16 %v73
    %v136 = vunpack.c.h.b16 %v73
    %v137 = vunpack.c.l.b16 %v74
    %v138 = vunpack.c.h.b16 %v74
    %v139 = vunpack.c.l.b16 %v75
    %v140 = vunpack.c.h.b16 %v75
    %v141 = vpack.c.b16 %v127, %v125
    %v142 = vpack.c.b16 %v128, %v126
    %v143 = vpack.c.b16 %v131, %v129
    %v144 = vpack.c.b16 %v132, %v130
    %v145 = vpack.c.b16 %v135, %v133
    %v146 = vpack.c.b16 %v136, %v134
    %v147 = vpack.c.b16 %v139, %v137
    %v148 = vpack.c.b16 %v140, %v138
    %vm157 = vcmask 523264
    %v159 = vsel %vm157, %v113, 0
    %v162 = vsel %vm157, %v114, 0
    %v165 = vsel %vm157, %v115, 0
    %v168 = vsel %vm157, %v116, 0
    %170 = vmatprep.subr.bf16.mxu0 %v142
    %171 = vmatpush1.bf16.msra.mxu0 %v141
    %172 = vmatprep.subr.bf16.mxu0 %v144
    %173 = vmatpush1.bf16.msra.mxu0 %v143
    %174 = vmatprep.subr.bf16.mxu0 %v146
    %175 = vmatpush1.bf16.msra.mxu0 %v145
    %176 = vmatprep.subr.bf16.mxu0 %v148
    %177 = vmatpush1.bf16.msra.mxu0 %v147
    %178 = vmatprep.subr.bf16.mxu0 0
    %179 = vmatpush1.bf16.msra.mxu0 0
    %180 = vmatprep.subr.bf16.mxu0 0
    %181 = vmatpush1.bf16.msra.mxu0 0
    %182 = vmatprep.subr.bf16.mxu0 0
    %183 = vmatpush1.bf16.msra.mxu0 0
    %184 = vmatprep.subr.bf16.mxu0 0
    %185 = vmatpush1.bf16.msra.mxu0 0
    %186 = vmatprep.subr.bf16.mxu0 0
    %187 = vmatpush1.bf16.msra.mxu0 0
    %188 = vmatprep.subr.bf16.mxu0 0
    %189 = vmatpush1.bf16.msra.mxu0 0
    %190 = vmatprep.subr.bf16.mxu0 0
    %191 = vmatpush1.bf16.msra.mxu0 0
    %192 = vmatprep.subr.bf16.mxu0 0
    %193 = vmatpush1.bf16.msra.mxu0 0
    %194 = vmatprep.subr.bf16.mxu0 0
    %195 = vmatpush1.bf16.msra.mxu0 0
    %196 = vmatprep.subr.bf16.mxu0 0
    %197 = vmatpush1.bf16.msra.mxu0 0
    %198 = vmatprep.subr.bf16.mxu0 0
    %199 = vmatpush1.bf16.msra.mxu0 0
    %200 = vmatprep.subr.bf16.mxu0 0
    %201 = vmatpush1.bf16.msra.mxu0 0
    %202 = vmatprep.mubr.bf16.mxu0 0
    %203 = vmatmul.mubr.bf16.gmra.mrb[0].mxu0 %v159
    %v204 = vpop.f32.mrb[0].mxu0
    %v205 = vadd.f32 %v92, %v204
    %v206 = vpop.f32.mrb[0].mxu0
    %v207 = vadd.f32 %v96, %v206
    %v208 = vpop.f32.mrb[0].mxu0
    %v209 = vadd.f32 %v92, %v208
    %v210 = vpop.f32.mrb[0].mxu0
    %v211 = vadd.f32 %v96, %v210
    %212 = vmatprep.mubr.bf16.mxu0 0
    %213 = vmatmul.mubr.bf16.gmra.mrb[0].mxu0 %v162
    %v214 = vpop.f32.mrb[0].mxu0
    %v215 = vadd.f32 %v92, %v214
    %v216 = vpop.f32.mrb[0].mxu0
    %v217 = vadd.f32 %v96, %v216
    %v218 = vpop.f32.mrb[0].mxu0
    %v219 = vadd.f32 %v92, %v218
    %v220 = vpop.f32.mrb[0].mxu0
    %v221 = vadd.f32 %v96, %v220
    %222 = vmatprep.mubr.bf16.mxu0 0
    %223 = vmatmul.mubr.bf16.gmra.mrb[0].mxu0 %v165
    %v224 = vpop.f32.mrb[0].mxu0
    %v225 = vadd.f32 %v92, %v224
    %v226 = vpop.f32.mrb[0].mxu0
    %v227 = vadd.f32 %v96, %v226
    %v228 = vpop.f32.mrb[0].mxu0
    %v229 = vadd.f32 %v92, %v228
    %v230 = vpop.f32.mrb[0].mxu0
    %v231 = vadd.f32 %v96, %v230
    %232 = vmatprep.mubr.bf16.mxu0 0
    %233 = vmatmul.mubr.bf16.gmra.mrb[0].mxu0 %v168
    %v234 = vpop.f32.mrb[0].mxu0
    %v235 = vadd.f32 %v92, %v234
    %v236 = vpop.f32.mrb[0].mxu0
    %v237 = vadd.f32 %v96, %v236
    %v238 = vpop.f32.mrb[0].mxu0
    %v239 = vadd.f32 %v92, %v238
    %v240 = vpop.f32.mrb[0].mxu0
    %v241 = vadd.f32 %v96, %v240
    %242 = vdwg.mxu0
    %v243 = vpack.c.bf16 %v209, %v205
    %v244 = vpack.c.bf16 %v211, %v207
    %v245 = vpack.c.bf16 %v219, %v215
    %v246 = vpack.c.bf16 %v221, %v217
    %v247 = vpack.c.bf16 %v229, %v225
    %v248 = vpack.c.bf16 %v231, %v227
    %v249 = vpack.c.bf16 %v239, %v235
    %v250 = vpack.c.bf16 %v241, %v237
    %251 = vst [vmem:[#allocation2] sm:$0xff] %v243
    %252 = vst.msk [vmem:[#allocation2 + $0x8] sm:$0xff] %vm157, %v244
    %253 = vst [vmem:[#allocation2 + $0x10] sm:$0xff] %v245
    %254 = vst.msk [vmem:[#allocation2 + $0x18] sm:$0xff] %vm157, %v246
    %255 = vst [vmem:[#allocation2 + $0x20] sm:$0xff] %v247
    %256 = vst.msk [vmem:[#allocation2 + $0x28] sm:$0xff] %vm157, %v248
    %257 = vst [vmem:[#allocation2 + $0x30] sm:$0xff] %v249
    %258 = vst.msk [vmem:[#allocation2 + $0x38] sm:$0xff] %vm157, %v250
    %v259 = vld [vmem:[#allocation2] sm:$0xff]
    %v260 = vld [vmem:[#allocation2 + $0x8] sm:$0xff]
    %262 = vrot.lane.b32.xlu0 %v259, 64
    %v263 = vpop.permute.xlu0 %262
    %vm264 = vcmask 261120
    %v266 = vsel %vm264, %v259, 0
    %v269 = vsel %vm264, %v263, 0
    %271 = vmatprep.subr.bf16.mxu0 0
    %272 = vmatpush1.bf16.xpose.msra.mxu0 %v269
    %273 = vmatprep.subr.bf16.mxu0 0
    %274 = vmatpush1.bf16.xpose.msra.mxu0 0
    %275 = vmatprep.subr.bf16.mxu0 0
    %276 = vmatpush1.bf16.xpose.msra.mxu0 0
    %277 = vmatprep.subr.bf16.mxu0 0
    %278 = vmatpush1.bf16.xpose.msra.mxu0 0
    %279 = vmatprep.subr.bf16.mxu0 0
    %280 = vmatpush1.bf16.xpose.msra.mxu0 0
    %281 = vmatprep.subr.bf16.mxu0 0
    %282 = vmatpush1.bf16.xpose.msra.mxu0 0
    %283 = vmatprep.subr.bf16.mxu0 0
    %284 = vmatpush1.bf16.xpose.msra.mxu0 0
    %285 = vmatprep.subr.bf16.mxu0 0
    %286 = vmatpush1.bf16.xpose.msra.mxu0 0
    %287 = vmatprep.subr.bf16.mxu0 0
    %288 = vmatpush1.bf16.xpose.msra.mxu0 0
    %289 = vmatprep.subr.bf16.mxu0 0
    %290 = vmatpush1.bf16.xpose.msra.mxu0 0
    %291 = vmatprep.subr.bf16.mxu0 0
    %292 = vmatpush1.bf16.xpose.msra.mxu0 0
    %293 = vmatprep.subr.bf16.mxu0 0
    %294 = vmatpush1.bf16.xpose.msra.mxu0 0
    %295 = vmatprep.subr.bf16.mxu0 0
    %296 = vmatpush1.bf16.xpose.msra.mxu0 0
    %297 = vmatprep.subr.bf16.mxu0 0
    %298 = vmatpush1.bf16.xpose.msra.mxu0 0
    %299 = vmatprep.subr.bf16.mxu0 0
    %300 = vmatpush1.bf16.xpose.msra.mxu0 0
    %301 = vmatprep.subr.bf16.mxu0 0
    %302 = vmatpush1.bf16.xpose.msra.mxu0 0
    %303 = vmatprep.mubr.bf16.mxu0 0
    %304 = vmatmul.mubr.bf16.gmra.mrb[0].mxu0 %v266
    %v305 = vpop.f32.mrb[0].mxu0
    %v306 = vadd.f32 0.0, %v305
    %v307 = vpop.f32.mrb[0].mxu0
    %v308 = vpop.f32.mrb[0].mxu0
    %v309 = vadd.f32 0.0, %v308
    %v310 = vpop.f32.mrb[0].mxu0
    %311 = vdwg.mxu0
    %v312 = vmul.f32 %v306, 0.17675781
    %v313 = vmul.f32 %v309, 0.17675781
    %vm314 = vcmask 130048
    %v315 = vsel %vm314, %v312, -inf
    %316 = vmax.xlane.f32.xlu0 %v315
    %v317 = vpop.xlane.xlu0 %316
    %v318 = vsel %vm314, %v313, -inf
    %319 = vmax.xlane.f32.xlu0 %v318
    %v320 = vpop.xlane.xlu0 %319
    %v321 = vsub.f32 %v312, %v317
    %v322 = vsub.f32 %v313, %v320
    %v323 = vmul.f32 %v321, 1.442695
    %v324 = vpow.pop %v323
    %v325 = vmul.f32 %v322, 1.442695
    %v326 = vpow.pop %v325
    %v327 = vsel %vm314, %v324, 0.0
    %328 = vadd.xlane.f32.xlu0 %v327
    %v329 = vpop.xlane.xlu0 %328
    %v330 = vsel %vm314, %v326, 0.0
    %331 = vadd.xlane.f32.xlu0 %v330
    %v332 = vpop.xlane.xlu0 %331
    %v333 = vrcp.pop %v329
    %v334 = vrcp.pop %v332
    %v335 = vmul.f32 %v324, %v333
    %v336 = vmul.f32 %v326, %v334
    %v337 = vpack.c.bf16 %v336, %v335
    %v339 = vsel %vm314, %v337, 0
    %341 = vmatprep.subr.bf16.mxu0 0
    %342 = vmatpush1.bf16.msra.mxu0 %v260
    %343 = vmatprep.subr.bf16.mxu0 0
    %344 = vmatpush1.bf16.msra.mxu0 0
    %345 = vmatprep.subr.bf16.mxu0 0
    %346 = vmatpush1.bf16.msra.mxu0 0
    %347 = vmatprep.subr.bf16.mxu0 0
    %348 = vmatpush1.bf16.msra.mxu0 0
    %349 = vmatprep.subr.bf16.mxu0 0
    %350 = vmatpush1.bf16.msra.mxu0 0
    %351 = vmatprep.subr.bf16.mxu0 0
    %352 = vmatpush1.bf16.msra.mxu0 0
    %353 = vmatprep.subr.bf16.mxu0 0
    %354 = vmatpush1.bf16.msra.mxu0 0
    %355 = vmatprep.subr.bf16.mxu0 0
    %356 = vmatpush1.bf16.msra.mxu0 0
    %357 = vmatprep.subr.bf16.mxu0 0
    %358 = vmatpush1.bf16.msra.mxu0 0
    %359 = vmatprep.subr.bf16.mxu0 0
    %360 = vmatpush1.bf16.msra.mxu0 0
    %361 = vmatprep.subr.bf16.mxu0 0
    %362 = vmatpush1.bf16.msra.mxu0 0
    %363 = vmatprep.subr.bf16.mxu0 0
    %364 = vmatpush1.bf16.msra.mxu0 0
    %365 = vmatprep.subr.bf16.mxu0 0
    %366 = vmatpush1.bf16.msra.mxu0 0
    %367 = vmatprep.subr.bf16.mxu0 0
    %368 = vmatpush1.bf16.msra.mxu0 0
    %369 = vmatprep.subr.bf16.mxu0 0
    %370 = vmatpush1.bf16.msra.mxu0 0
    %371 = vmatprep.subr.bf16.mxu0 0
    %372 = vmatpush1.bf16.msra.mxu0 0
    %373 = vmatprep.mubr.bf16.mxu0 0
    %374 = vmatmul.mubr.bf16.gmra.mrb[0].mxu0 %v339
    %v375 = vpop.f32.mrb[0].mxu0
    %v376 = vadd.f32 0.0, %v375
    %v377 = vpop.f32.mrb[0].mxu0
    %v378 = vpop.f32.mrb[0].mxu0
    %v379 = vadd.f32 0.0, %v378
    %v380 = vpop.f32.mrb[0].mxu0
    %381 = vdwg.mxu0
    %v382 = vpack.c.bf16 %v379, %v376
    %383 = vst.msk [vmem:[#allocation3] sm:$0xff] %vm264, %v382
    %v384 = vld [vmem:[#allocation2] sm:$0xff]
    %v385 = vld [vmem:[#allocation2 + $0x8] sm:$0xff]
    %387 = vrot.lane.b32.xlu0 %v384, 96
    %v388 = vpop.permute.xlu0 %387
    %389 = vrot.lane.b32.xlu0 %v384, 32
    %v390 = vpop.permute.xlu0 %389
    %v392 = vsel %vm264, %v388, 0
    %v395 = vsel %vm264, %v390, 0
    %397 = vmatprep.subr.bf16.mxu0 0
    %398 = vmatpush1.bf16.xpose.msra.mxu0 %v395
    %399 = vmatprep.subr.bf16.mxu0 0
    %400 = vmatpush1.bf16.xpose.msra.mxu0 0
    %401 = vmatprep.subr.bf16.mxu0 0
    %402 = vmatpush1.bf16.xpose.msra.mxu0 0
    %403 = vmatprep.subr.bf16.mxu0 0
    %404 = vmatpush1.bf16.xpose.msra.mxu0 0
    %405 = vmatprep.subr.bf16.mxu0 0
    %406 = vmatpush1.bf16.xpose.msra.mxu0 0
    %407 = vmatprep.subr.bf16.mxu0 0
    %408 = vmatpush1.bf16.xpose.msra.mxu0 0
    %409 = vmatprep.subr.bf16.mxu0 0
    %410 = vmatpush1.bf16.xpose.msra.mxu0 0
    %411 = vmatprep.subr.bf16.mxu0 0
    %412 = vmatpush1.bf16.xpose.msra.mxu0 0
    %413 = vmatprep.subr.bf16.mxu0 0
    %414 = vmatpush1.bf16.xpose.msra.mxu0 0
    %415 = vmatprep.subr.bf16.mxu0 0
    %416 = vmatpush1.bf16.xpose.msra.mxu0 0
    %417 = vmatprep.subr.bf16.mxu0 0
    %418 = vmatpush1.bf16.xpose.msra.mxu0 0
    %419 = vmatprep.subr.bf16.mxu0 0
    %420 = vmatpush1.bf16.xpose.msra.mxu0 0
    %421 = vmatprep.subr.bf16.mxu0 0
    %422 = vmatpush1.bf16.xpose.msra.mxu0 0
    %423 = vmatprep.subr.bf16.mxu0 0
    %424 = vmatpush1.bf16.xpose.msra.mxu0 0
    %425 = vmatprep.subr.bf16.mxu0 0
    %426 = vmatpush1.bf16.xpose.msra.mxu0 0
    %427 = vmatprep.subr.bf16.mxu0 0
    %428 = vmatpush1.bf16.xpose.msra.mxu0 0
    %429 = vmatprep.mubr.bf16.mxu0 0
    %430 = vmatmul.mubr.bf16.gmra.mrb[0].mxu0 %v392
    %v431 = vpop.f32.mrb[0].mxu0
    %v432 = vadd.f32 0.0, %v431
    %v433 = vpop.f32.mrb[0].mxu0
    %v434 = vpop.f32.mrb[0].mxu0
    %v435 = vadd.f32 0.0, %v434
    %v436 = vpop.f32.mrb[0].mxu0
    %437 = vdwg.mxu0
    %v438 = vmul.f32 %v432, 0.17675781
    %v439 = vmul.f32 %v435, 0.17675781
    %v440 = vsel %vm314, %v438, -inf
    %441 = vmax.xlane.f32.xlu0 %v440
    %v442 = vpop.xlane.xlu0 %441
    %v443 = vsel %vm314, %v439, -inf
    %444 = vmax.xlane.f32.xlu0 %v443
    %v445 = vpop.xlane.xlu0 %444
    %v446 = vsub.f32 %v438, %v442
    %v447 = vsub.f32 %v439, %v445
    %v448 = vmul.f32 %v446, 1.442695
    %v449 = vpow.pop %v448
    %v450 = vmul.f32 %v447, 1.442695
    %v451 = vpow.pop %v450
    %v452 = vsel %vm314, %v449, 0.0
    %453 = vadd.xlane.f32.xlu0 %v452
    %v454 = vpop.xlane.xlu0 %453
    %v455 = vsel %vm314, %v451, 0.0
    %456 = vadd.xlane.f32.xlu0 %v455
    %v457 = vpop.xlane.xlu0 %456
    %v458 = vrcp.pop %v454
    %v459 = vrcp.pop %v457
    %v460 = vmul.f32 %v449, %v458
    %v461 = vmul.f32 %v451, %v459
    %v462 = vpack.c.bf16 %v461, %v460
    %464 = vrot.lane.b32.xlu0 %v385, 96
    %v465 = vpop.permute.xlu0 %464
    %v468 = vsel %vm314, %v462, 0
    %470 = vmatprep.subr.bf16.mxu0 0
    %471 = vmatpush1.bf16.msra.mxu0 %v465
    %472 = vmatprep.subr.bf16.mxu0 0
    %473 = vmatpush1.bf16.msra.mxu0 0
    %474 = vmatprep.subr.bf16.mxu0 0
    %475 = vmatpush1.bf16.msra.mxu0 0
    %476 = vmatprep.subr.bf16.mxu0 0
    %477 = vmatpush1.bf16.msra.mxu0 0
    %478 = vmatprep.subr.bf16.mxu0 0
    %479 = vmatpush1.bf16.msra.mxu0 0
    %480 = vmatprep.subr.bf16.mxu0 0
    %481 = vmatpush1.bf16.msra.mxu0 0
    %482 = vmatprep.subr.bf16.mxu0 0
    %483 = vmatpush1.bf16.msra.mxu0 0
    %484 = vmatprep.subr.bf16.mxu0 0
    %485 = vmatpush1.bf16.msra.mxu0 0
    %486 = vmatprep.subr.bf16.mxu0 0
    %487 = vmatpush1.bf16.msra.mxu0 0
    %488 = vmatprep.subr.bf16.mxu0 0
    %489 = vmatpush1.bf16.msra.mxu0 0
    %490 = vmatprep.subr.bf16.mxu0 0
    %491 = vmatpush1.bf16.msra.mxu0 0
    %492 = vmatprep.subr.bf16.mxu0 0
    %493 = vmatpush1.bf16.msra.mxu0 0
    %494 = vmatprep.subr.bf16.mxu0 0
    %495 = vmatpush1.bf16.msra.mxu0 0
    %496 = vmatprep.subr.bf16.mxu0 0
    %497 = vmatpush1.bf16.msra.mxu0 0
    %498 = vmatprep.subr.bf16.mxu0 0
    %499 = vmatpush1.bf16.msra.mxu0 0
    %500 = vmatprep.subr.bf16.mxu0 0
    %501 = vmatpush1.bf16.msra.mxu0 0
    %502 = vmatprep.mubr.bf16.mxu0 0
    %503 = vmatmul.mubr.bf16.gmra.mrb[0].mxu0 %v468
    %v504 = vpop.f32.mrb[0].mxu0
    %v505 = vadd.f32 0.0, %v504
    %v506 = vpop.f32.mrb[0].mxu0
    %v507 = vpop.f32.mrb[0].mxu0
    %v508 = vadd.f32 0.0, %v507
    %v509 = vpop.f32.mrb[0].mxu0
    %510 = vdwg.mxu0
    %v511 = vpack.c.bf16 %v508, %v505
    %513 = vrot.lane.b32.xlu0 %v511, 32
    %v514 = vpop.permute.xlu0 %513
    %vm516 = vcmask 523520
    %517 = vst.msk [vmem:[#allocation3] sm:$0xff] %vm516, %v514
    %v518 = vld [vmem:[#allocation2 + $0x10] sm:$0xff]
    %v519 = vld [vmem:[#allocation2 + $0x18] sm:$0xff]
    %521 = vrot.lane.b32.xlu0 %v518, 64
    %v522 = vpop.permute.xlu0 %521
    %v524 = vsel %vm264, %v518, 0
    %v527 = vsel %vm264, %v522, 0
    %529 = vmatprep.subr.bf16.mxu0 0
    %530 = vmatpush1.bf16.xpose.msra.mxu0 %v527
    %531 = vmatprep.subr.bf16.mxu0 0
    %532 = vmatpush1.bf16.xpose.msra.mxu0 0
    %533 = vmatprep.subr.bf16.mxu0 0
    %534 = vmatpush1.bf16.xpose.msra.mxu0 0
    %535 = vmatprep.subr.bf16.mxu0 0
    %536 = vmatpush1.bf16.xpose.msra.mxu0 0
    %537 = vmatprep.subr.bf16.mxu0 0
    %538 = vmatpush1.bf16.xpose.msra.mxu0 0
    %539 = vmatprep.subr.bf16.mxu0 0
    %540 = vmatpush1.bf16.xpose.msra.mxu0 0
    %541 = vmatprep.subr.bf16.mxu0 0
    %542 = vmatpush1.bf16.xpose.msra.mxu0 0
    %543 = vmatprep.subr.bf16.mxu0 0
    %544 = vmatpush1.bf16.xpose.msra.mxu0 0
    %545 = vmatprep.subr.bf16.mxu0 0
    %546 = vmatpush1.bf16.xpose.msra.mxu0 0
    %547 = vmatprep.subr.bf16.mxu0 0
    %548 = vmatpush1.bf16.xpose.msra.mxu0 0
    %549 = vmatprep.subr.bf16.mxu0 0
    %550 = vmatpush1.bf16.xpose.msra.mxu0 0
    %551 = vmatprep.subr.bf16.mxu0 0
    %552 = vmatpush1.bf16.xpose.msra.mxu0 0
    %553 = vmatprep.subr.bf16.mxu0 0
    %554 = vmatpush1.bf16.xpose.msra.mxu0 0
    %555 = vmatprep.subr.bf16.mxu0 0
    %556 = vmatpush1.bf16.xpose.msra.mxu0 0
    %557 = vmatprep.subr.bf16.mxu0 0
    %558 = vmatpush1.bf16.xpose.msra.mxu0 0
    %559 = vmatprep.subr.bf16.mxu0 0
    %560 = vmatpush1.bf16.xpose.msra.mxu0 0
    %561 = vmatprep.mubr.bf16.mxu0 0
    %562 = vmatmul.mubr.bf16.gmra.mrb[0].mxu0 %v524
    %v563 = vpop.f32.mrb[0].mxu0
    %v564 = vadd.f32 0.0, %v563
    %v565 = vpop.f32.mrb[0].mxu0
    %v566 = vpop.f32.mrb[0].mxu0
    %v567 = vadd.f32 0.0, %v566
    %v568 = vpop.f32.mrb[0].mxu0
    %569 = vdwg.mxu0
    %v570 = vmul.f32 %v564, 0.17675781
    %v571 = vmul.f32 %v567, 0.17675781
    %v572 = vsel %vm314, %v570, -inf
    %573 = vmax.xlane.f32.xlu0 %v572
    %v574 = vpop.xlane.xlu0 %573
    %v575 = vsel %vm314, %v571, -inf
    %576 = vmax.xlane.f32.xlu0 %v575
    %v577 = vpop.xlane.xlu0 %576
    %v578 = vsub.f32 %v570, %v574
    %v579 = vsub.f32 %v571, %v577
    %v580 = vmul.f32 %v578, 1.442695
    %v581 = vpow.pop %v580
    %v582 = vmul.f32 %v579, 1.442695
    %v583 = vpow.pop %v582
    %v584 = vsel %vm314, %v581, 0.0
    %585 = vadd.xlane.f32.xlu0 %v584
    %v586 = vpop.xlane.xlu0 %585
    %v587 = vsel %vm314, %v583, 0.0
    %588 = vadd.xlane.f32.xlu0 %v587
    %v589 = vpop.xlane.xlu0 %588
    %v590 = vrcp.pop %v586
    %v591 = vrcp.pop %v589
    %v592 = vmul.f32 %v581, %v590
    %v593 = vmul.f32 %v583, %v591
    %v594 = vpack.c.bf16 %v593, %v592
    %v596 = vsel %vm314, %v594, 0
    %598 = vmatprep.subr.bf16.mxu0 0
    %599 = vmatpush1.bf16.msra.mxu0 %v519
    %600 = vmatprep.subr.bf16.mxu0 0
    %601 = vmatpush1.bf16.msra.mxu0 0
    %602 = vmatprep.subr.bf16.mxu0 0
    %603 = vmatpush1.bf16.msra.mxu0 0
    %604 = vmatprep.subr.bf16.mxu0 0
    %605 = vmatpush1.bf16.msra.mxu0 0
    %606 = vmatprep.subr.bf16.mxu0 0
    %607 = vmatpush1.bf16.msra.mxu0 0
    %608 = vmatprep.subr.bf16.mxu0 0
    %609 = vmatpush1.bf16.msra.mxu0 0
    %610 = vmatprep.subr.bf16.mxu0 0
    %611 = vmatpush1.bf16.msra.mxu0 0
    %612 = vmatprep.subr.bf16.mxu0 0
    %613 = vmatpush1.bf16.msra.mxu0 0
    %614 = vmatprep.subr.bf16.mxu0 0
    %615 = vmatpush1.bf16.msra.mxu0 0
    %616 = vmatprep.subr.bf16.mxu0 0
    %617 = vmatpush1.bf16.msra.mxu0 0
    %618 = vmatprep.subr.bf16.mxu0 0
    %619 = vmatpush1.bf16.msra.mxu0 0
    %620 = vmatprep.subr.bf16.mxu0 0
    %621 = vmatpush1.bf16.msra.mxu0 0
    %622 = vmatprep.subr.bf16.mxu0 0
    %623 = vmatpush1.bf16.msra.mxu0 0
    %624 = vmatprep.subr.bf16.mxu0 0
    %625 = vmatpush1.bf16.msra.mxu0 0
    %626 = vmatprep.subr.bf16.mxu0 0
    %627 = vmatpush1.bf16.msra.mxu0 0
    %628 = vmatprep.subr.bf16.mxu0 0
    %629 = vmatpush1.bf16.msra.mxu0 0
    %630 = vmatprep.mubr.bf16.mxu0 0
    %631 = vmatmul.mubr.bf16.gmra.mrb[0].mxu0 %v596
    %v632 = vpop.f32.mrb[0].mxu0
    %v633 = vadd.f32 0.0, %v632
    %v634 = vpop.f32.mrb[0].mxu0
    %v635 = vpop.f32.mrb[0].mxu0
    %v636 = vadd.f32 0.0, %v635
    %v637 = vpop.f32.mrb[0].mxu0
    %638 = vdwg.mxu0
    %v639 = vpack.c.bf16 %v636, %v633
    %640 = vst.msk [vmem:[#allocation3 + $0x8] sm:$0xff] %vm264, %v639
    %v641 = vld [vmem:[#allocation2 + $0x10] sm:$0xff]
    %v642 = vld [vmem:[#allocation2 + $0x18] sm:$0xff]
    %644 = vrot.lane.b32.xlu0 %v641, 96
    %v645 = vpop.permute.xlu0 %644
    %646 = vrot.lane.b32.xlu0 %v641, 32
    %v647 = vpop.permute.xlu0 %646
    %v649 = vsel %vm264, %v645, 0
    %v652 = vsel %vm264, %v647, 0
    %654 = vmatprep.subr.bf16.mxu0 0
    %655 = vmatpush1.bf16.xpose.msra.mxu0 %v652
    %656 = vmatprep.subr.bf16.mxu0 0
    %657 = vmatpush1.bf16.xpose.msra.mxu0 0
    %658 = vmatprep.subr.bf16.mxu0 0
    %659 = vmatpush1.bf16.xpose.msra.mxu0 0
    %660 = vmatprep.subr.bf16.mxu0 0
    %661 = vmatpush1.bf16.xpose.msra.mxu0 0
    %662 = vmatprep.subr.bf16.mxu0 0
    %663 = vmatpush1.bf16.xpose.msra.mxu0 0
    %664 = vmatprep.subr.bf16.mxu0 0
    %665 = vmatpush1.bf16.xpose.msra.mxu0 0
    %666 = vmatprep.subr.bf16.mxu0 0
    %667 = vmatpush1.bf16.xpose.msra.mxu0 0
    %668 = vmatprep.subr.bf16.mxu0 0
    %669 = vmatpush1.bf16.xpose.msra.mxu0 0
    %670 = vmatprep.subr.bf16.mxu0 0
    %671 = vmatpush1.bf16.xpose.msra.mxu0 0
    %672 = vmatprep.subr.bf16.mxu0 0
    %673 = vmatpush1.bf16.xpose.msra.mxu0 0
    %674 = vmatprep.subr.bf16.mxu0 0
    %675 = vmatpush1.bf16.xpose.msra.mxu0 0
    %676 = vmatprep.subr.bf16.mxu0 0
    %677 = vmatpush1.bf16.xpose.msra.mxu0 0
    %678 = vmatprep.subr.bf16.mxu0 0
    %679 = vmatpush1.bf16.xpose.msra.mxu0 0
    %680 = vmatprep.subr.bf16.mxu0 0
    %681 = vmatpush1.bf16.xpose.msra.mxu0 0
    %682 = vmatprep.subr.bf16.mxu0 0
    %683 = vmatpush1.bf16.xpose.msra.mxu0 0
    %684 = vmatprep.subr.bf16.mxu0 0
    %685 = vmatpush1.bf16.xpose.msra.mxu0 0
    %686 = vmatprep.mubr.bf16.mxu0 0
    %687 = vmatmul.mubr.bf16.gmra.mrb[0].mxu0 %v649
    %v688 = vpop.f32.mrb[0].mxu0
    %v689 = vadd.f32 0.0, %v688
    %v690 = vpop.f32.mrb[0].mxu0
    %v691 = vpop.f32.mrb[0].mxu0
    %v692 = vadd.f32 0.0, %v691
    %v693 = vpop.f32.mrb[0].mxu0
    %694 = vdwg.mxu0
    %v695 = vmul.f32 %v689, 0.17675781
    %v696 = vmul.f32 %v692, 0.17675781
    %v697 = vsel %vm314, %v695, -inf
    %698 = vmax.xlane.f32.xlu0 %v697
    %v699 = vpop.xlane.xlu0 %698
    %v700 = vsel %vm314, %v696, -inf
    %701 = vmax.xlane.f32.xlu0 %v700
    %v702 = vpop.xlane.xlu0 %701
    %v703 = vsub.f32 %v695, %v699
    %v704 = vsub.f32 %v696, %v702
    %v705 = vmul.f32 %v703, 1.442695
    %v706 = vpow.pop %v705
    %v707 = vmul.f32 %v704, 1.442695
    %v708 = vpow.pop %v707
    %v709 = vsel %vm314, %v706, 0.0
    %710 = vadd.xlane.f32.xlu0 %v709
    %v711 = vpop.xlane.xlu0 %710
    %v712 = vsel %vm314, %v708, 0.0
    %713 = vadd.xlane.f32.xlu0 %v712
    %v714 = vpop.xlane.xlu0 %713
    %v715 = vrcp.pop %v711
    %v716 = vrcp.pop %v714
    %v717 = vmul.f32 %v706, %v715
    %v718 = vmul.f32 %v708, %v716
    %v719 = vpack.c.bf16 %v718, %v717
    %721 = vrot.lane.b32.xlu0 %v642, 96
    %v722 = vpop.permute.xlu0 %721
    %v725 = vsel %vm314, %v719, 0
    %727 = vmatprep.subr.bf16.mxu0 0
    %728 = vmatpush1.bf16.msra.mxu0 %v722
    %729 = vmatprep.subr.bf16.mxu0 0
    %730 = vmatpush1.bf16.msra.mxu0 0
    %731 = vmatprep.subr.bf16.mxu0 0
    %732 = vmatpush1.bf16.msra.mxu0 0
    %733 = vmatprep.subr.bf16.mxu0 0
    %734 = vmatpush1.bf16.msra.mxu0 0
    %735 = vmatprep.subr.bf16.mxu0 0
    %736 = vmatpush1.bf16.msra.mxu0 0
    %737 = vmatprep.subr.bf16.mxu0 0
    %738 = vmatpush1.bf16.msra.mxu0 0
    %739 = vmatprep.subr.bf16.mxu0 0
    %740 = vmatpush1.bf16.msra.mxu0 0
    %741 = vmatprep.subr.bf16.mxu0 0
    %742 = vmatpush1.bf16.msra.mxu0 0
    %743 = vmatprep.subr.bf16.mxu0 0
    %744 = vmatpush1.bf16.msra.mxu0 0
    %745 = vmatprep.subr.bf16.mxu0 0
    %746 = vmatpush1.bf16.msra.mxu0 0
    %747 = vmatprep.subr.bf16.mxu0 0
    %748 = vmatpush1.bf16.msra.mxu0 0
    %749 = vmatprep.subr.bf16.mxu0 0
    %750 = vmatpush1.bf16.msra.mxu0 0
    %751 = vmatprep.subr.bf16.mxu0 0
    %752 = vmatpush1.bf16.msra.mxu0 0
    %753 = vmatprep.subr.bf16.mxu0 0
    %754 = vmatpush1.bf16.msra.mxu0 0
    %755 = vmatprep.subr.bf16.mxu0 0
    %756 = vmatpush1.bf16.msra.mxu0 0
    %757 = vmatprep.subr.bf16.mxu0 0
    %758 = vmatpush1.bf16.msra.mxu0 0
    %759 = vmatprep.mubr.bf16.mxu0 0
    %760 = vmatmul.mubr.bf16.gmra.mrb[0].mxu0 %v725
    %v761 = vpop.f32.mrb[0].mxu0
    %v762 = vadd.f32 0.0, %v761
    %v763 = vpop.f32.mrb[0].mxu0
    %v764 = vpop.f32.mrb[0].mxu0
    %v765 = vadd.f32 0.0, %v764
    %v766 = vpop.f32.mrb[0].mxu0
    %767 = vdwg.mxu0
    %v768 = vpack.c.bf16 %v765, %v762
    %770 = vrot.lane.b32.xlu0 %v768, 32
    %v771 = vpop.permute.xlu0 %770
    %773 = vst.msk [vmem:[#allocation3 + $0x8] sm:$0xff] %vm516, %v771
    %v774 = vld [vmem:[#allocation2 + $0x20] sm:$0xff]
    %v775 = vld [vmem:[#allocation2 + $0x28] sm:$0xff]
    %777 = vrot.lane.b32.xlu0 %v774, 64
    %v778 = vpop.permute.xlu0 %777
    %v780 = vsel %vm264, %v774, 0
    %v783 = vsel %vm264, %v778, 0
    %785 = vmatprep.subr.bf16.mxu0 0
    %786 = vmatpush1.bf16.xpose.msra.mxu0 %v783
    %787 = vmatprep.subr.bf16.mxu0 0
    %788 = vmatpush1.bf16.xpose.msra.mxu0 0
    %789 = vmatprep.subr.bf16.mxu0 0
    %790 = vmatpush1.bf16.xpose.msra.mxu0 0
    %791 = vmatprep.subr.bf16.mxu0 0
    %792 = vmatpush1.bf16.xpose.msra.mxu0 0
    %793 = vmatprep.subr.bf16.mxu0 0
    %794 = vmatpush1.bf16.xpose.msra.mxu0 0
    %795 = vmatprep.subr.bf16.mxu0 0
    %796 = vmatpush1.bf16.xpose.msra.mxu0 0
    %797 = vmatprep.subr.bf16.mxu0 0
    %798 = vmatpush1.bf16.xpose.msra.mxu0 0
    %799 = vmatprep.subr.bf16.mxu0 0
    %800 = vmatpush1.bf16.xpose.msra.mxu0 0
    %801 = vmatprep.subr.bf16.mxu0 0
    %802 = vmatpush1.bf16.xpose.msra.mxu0 0
    %803 = vmatprep.subr.bf16.mxu0 0
    %804 = vmatpush1.bf16.xpose.msra.mxu0 0
    %805 = vmatprep.subr.bf16.mxu0 0
    %806 = vmatpush1.bf16.xpose.msra.mxu0 0
    %807 = vmatprep.subr.bf16.mxu0 0
    %808 = vmatpush1.bf16.xpose.msra.mxu0 0
    %809 = vmatprep.subr.bf16.mxu0 0
    %810 = vmatpush1.bf16.xpose.msra.mxu0 0
    %811 = vmatprep.subr.bf16.mxu0 0
    %812 = vmatpush1.bf16.xpose.msra.mxu0 0
    %813 = vmatprep.subr.bf16.mxu0 0
    %814 = vmatpush1.bf16.xpose.msra.mxu0 0
    %815 = vmatprep.subr.bf16.mxu0 0
    %816 = vmatpush1.bf16.xpose.msra.mxu0 0
    %817 = vmatprep.mubr.bf16.mxu0 0
    %818 = vmatmul.mubr.bf16.gmra.mrb[0].mxu0 %v780
    %v819 = vpop.f32.mrb[0].mxu0
    %v820 = vadd.f32 0.0, %v819
    %v821 = vpop.f32.mrb[0].mxu0
    %v822 = vpop.f32.mrb[0].mxu0
    %v823 = vadd.f32 0.0, %v822
    %v824 = vpop.f32.mrb[0].mxu0
    %825 = vdwg.mxu0
    %v826 = vmul.f32 %v820, 0.17675781
    %v827 = vmul.f32 %v823, 0.17675781
    %v828 = vsel %vm314, %v826, -inf
    %829 = vmax.xlane.f32.xlu0 %v828
    %v830 = vpop.xlane.xlu0 %829
    %v831 = vsel %vm314, %v827, -inf
    %832 = vmax.xlane.f32.xlu0 %v831
    %v833 = vpop.xlane.xlu0 %832
    %v834 = vsub.f32 %v826, %v830
    %v835 = vsub.f32 %v827, %v833
    %v836 = vmul.f32 %v834, 1.442695
    %v837 = vpow.pop %v836
    %v838 = vmul.f32 %v835, 1.442695
    %v839 = vpow.pop %v838
    %v840 = vsel %vm314, %v837, 0.0
    %841 = vadd.xlane.f32.xlu0 %v840
    %v842 = vpop.xlane.xlu0 %841
    %v843 = vsel %vm314, %v839, 0.0
    %844 = vadd.xlane.f32.xlu0 %v843
    %v845 = vpop.xlane.xlu0 %844
    %v846 = vrcp.pop %v842
    %v847 = vrcp.pop %v845
    %v848 = vmul.f32 %v837, %v846
    %v849 = vmul.f32 %v839, %v847
    %v850 = vpack.c.bf16 %v849, %v848
    %v852 = vsel %vm314, %v850, 0
    %854 = vmatprep.subr.bf16.mxu0 0
    %855 = vmatpush1.bf16.msra.mxu0 %v775
    %856 = vmatprep.subr.bf16.mxu0 0
    %857 = vmatpush1.bf16.msra.mxu0 0
    %858 = vmatprep.subr.bf16.mxu0 0
    %859 = vmatpush1.bf16.msra.mxu0 0
    %860 = vmatprep.subr.bf16.mxu0 0
    %861 = vmatpush1.bf16.msra.mxu0 0
    %862 = vmatprep.subr.bf16.mxu0 0
    %863 = vmatpush1.bf16.msra.mxu0 0
    %864 = vmatprep.subr.bf16.mxu0 0
    %865 = vmatpush1.bf16.msra.mxu0 0
    %866 = vmatprep.subr.bf16.mxu0 0
    %867 = vmatpush1.bf16.msra.mxu0 0
    %868 = vmatprep.subr.bf16.mxu0 0
    %869 = vmatpush1.bf16.msra.mxu0 0
    %870 = vmatprep.subr.bf16.mxu0 0
    %871 = vmatpush1.bf16.msra.mxu0 0
    %872 = vmatprep.subr.bf16.mxu0 0
    %873 = vmatpush1.bf16.msra.mxu0 0
    %874 = vmatprep.subr.bf16.mxu0 0
    %875 = vmatpush1.bf16.msra.mxu0 0
    %876 = vmatprep.subr.bf16.mxu0 0
    %877 = vmatpush1.bf16.msra.mxu0 0
    %878 = vmatprep.subr.bf16.mxu0 0
    %879 = vmatpush1.bf16.msra.mxu0 0
    %880 = vmatprep.subr.bf16.mxu0 0
    %881 = vmatpush1.bf16.msra.mxu0 0
    %882 = vmatprep.subr.bf16.mxu0 0
    %883 = vmatpush1.bf16.msra.mxu0 0
    %884 = vmatprep.subr.bf16.mxu0 0
    %885 = vmatpush1.bf16.msra.mxu0 0
    %886 = vmatprep.mubr.bf16.mxu0 0
    %887 = vmatmul.mubr.bf16.gmra.mrb[0].mxu0 %v852
    %v888 = vpop.f32.mrb[0].mxu0
    %v889 = vadd.f32 0.0, %v888
    %v890 = vpop.f32.mrb[0].mxu0
    %v891 = vpop.f32.mrb[0].mxu0
    %v892 = vadd.f32 0.0, %v891
    %v893 = vpop.f32.mrb[0].mxu0
    %894 = vdwg.mxu0
    %v895 = vpack.c.bf16 %v892, %v889
    %896 = vst.msk [vmem:[#allocation3 + $0x10] sm:$0xff] %vm264, %v895
    %v897 = vld [vmem:[#allocation2 + $0x20] sm:$0xff]
    %v898 = vld [vmem:[#allocation2 + $0x28] sm:$0xff]
    %900 = vrot.lane.b32.xlu0 %v897, 96
    %v901 = vpop.permute.xlu0 %900
    %902 = vrot.lane.b32.xlu0 %v897, 32
    %v903 = vpop.permute.xlu0 %902
    %v905 = vsel %vm264, %v901, 0
    %v908 = vsel %vm264, %v903, 0
    %910 = vmatprep.subr.bf16.mxu0 0
    %911 = vmatpush1.bf16.xpose.msra.mxu0 %v908
    %912 = vmatprep.subr.bf16.mxu0 0
    %913 = vmatpush1.bf16.xpose.msra.mxu0 0
    %914 = vmatprep.subr.bf16.mxu0 0
    %915 = vmatpush1.bf16.xpose.msra.mxu0 0
    %916 = vmatprep.subr.bf16.mxu0 0
    %917 = vmatpush1.bf16.xpose.msra.mxu0 0
    %918 = vmatprep.subr.bf16.mxu0 0
    %919 = vmatpush1.bf16.xpose.msra.mxu0 0
    %920 = vmatprep.subr.bf16.mxu0 0
    %921 = vmatpush1.bf16.xpose.msra.mxu0 0
    %922 = vmatprep.subr.bf16.mxu0 0
    %923 = vmatpush1.bf16.xpose.msra.mxu0 0
    %924 = vmatprep.subr.bf16.mxu0 0
    %925 = vmatpush1.bf16.xpose.msra.mxu0 0
    %926 = vmatprep.subr.bf16.mxu0 0
    %927 = vmatpush1.bf16.xpose.msra.mxu0 0
    %928 = vmatprep.subr.bf16.mxu0 0
    %929 = vmatpush1.bf16.xpose.msra.mxu0 0
    %930 = vmatprep.subr.bf16.mxu0 0
    %931 = vmatpush1.bf16.xpose.msra.mxu0 0
    %932 = vmatprep.subr.bf16.mxu0 0
    %933 = vmatpush1.bf16.xpose.msra.mxu0 0
    %934 = vmatprep.subr.bf16.mxu0 0
    %935 = vmatpush1.bf16.xpose.msra.mxu0 0
    %936 = vmatprep.subr.bf16.mxu0 0
    %937 = vmatpush1.bf16.xpose.msra.mxu0 0
    %938 = vmatprep.subr.bf16.mxu0 0
    %939 = vmatpush1.bf16.xpose.msra.mxu0 0
    %940 = vmatprep.subr.bf16.mxu0 0
    %941 = vmatpush1.bf16.xpose.msra.mxu0 0
    %942 = vmatprep.mubr.bf16.mxu0 0
    %943 = vmatmul.mubr.bf16.gmra.mrb[0].mxu0 %v905
    %v944 = vpop.f32.mrb[0].mxu0
    %v945 = vadd.f32 0.0, %v944
    %v946 = vpop.f32.mrb[0].mxu0
    %v947 = vpop.f32.mrb[0].mxu0
    %v948 = vadd.f32 0.0, %v947
    %v949 = vpop.f32.mrb[0].mxu0
    %950 = vdwg.mxu0
    %v951 = vmul.f32 %v945, 0.17675781
    %v952 = vmul.f32 %v948, 0.17675781
    %v953 = vsel %vm314, %v951, -inf
    %954 = vmax.xlane.f32.xlu0 %v953
    %v955 = vpop.xlane.xlu0 %954
    %v956 = vsel %vm314, %v952, -inf
    %957 = vmax.xlane.f32.xlu0 %v956
    %v958 = vpop.xlane.xlu0 %957
    %v959 = vsub.f32 %v951, %v955
    %v960 = vsub.f32 %v952, %v958
    %v961 = vmul.f32 %v959, 1.442695
    %v962 = vpow.pop %v961
    %v963 = vmul.f32 %v960, 1.442695
    %v964 = vpow.pop %v963
    %v965 = vsel %vm314, %v962, 0.0
    %966 = vadd.xlane.f32.xlu0 %v965
    %v967 = vpop.xlane.xlu0 %966
    %v968 = vsel %vm314, %v964, 0.0
    %969 = vadd.xlane.f32.xlu0 %v968
    %v970 = vpop.xlane.xlu0 %969
    %v971 = vrcp.pop %v967
    %v972 = vrcp.pop %v970
    %v973 = vmul.f32 %v962, %v971
    %v974 = vmul.f32 %v964, %v972
    %v975 = vpack.c.bf16 %v974, %v973
    %977 = vrot.lane.b32.xlu0 %v898, 96
    %v978 = vpop.permute.xlu0 %977
    %v981 = vsel %vm314, %v975, 0
    %983 = vmatprep.subr.bf16.mxu0 0
    %984 = vmatpush1.bf16.msra.mxu0 %v978
    %985 = vmatprep.subr.bf16.mxu0 0
    %986 = vmatpush1.bf16.msra.mxu0 0
    %987 = vmatprep.subr.bf16.mxu0 0
    %988 = vmatpush1.bf16.msra.mxu0 0
    %989 = vmatprep.subr.bf16.mxu0 0
    %990 = vmatpush1.bf16.msra.mxu0 0
    %991 = vmatprep.subr.bf16.mxu0 0
    %992 = vmatpush1.bf16.msra.mxu0 0
    %993 = vmatprep.subr.bf16.mxu0 0
    %994 = vmatpush1.bf16.msra.mxu0 0
    %995 = vmatprep.subr.bf16.mxu0 0
    %996 = vmatpush1.bf16.msra.mxu0 0
    %997 = vmatprep.subr.bf16.mxu0 0
    %998 = vmatpush1.bf16.msra.mxu0 0
    %999 = vmatprep.subr.bf16.mxu0 0
    %1000 = vmatpush1.bf16.msra.mxu0 0
    %1001 = vmatprep.subr.bf16.mxu0 0
    %1002 = vmatpush1.bf16.msra.mxu0 0
    %1003 = vmatprep.subr.bf16.mxu0 0
    %1004 = vmatpush1.bf16.msra.mxu0 0
    %1005 = vmatprep.subr.bf16.mxu0 0
    %1006 = vmatpush1.bf16.msra.mxu0 0
    %1007 = vmatprep.subr.bf16.mxu0 0
    %1008 = vmatpush1.bf16.msra.mxu0 0
    %1009 = vmatprep.subr.bf16.mxu0 0
    %1010 = vmatpush1.bf16.msra.mxu0 0
    %1011 = vmatprep.subr.bf16.mxu0 0
    %1012 = vmatpush1.bf16.msra.mxu0 0
    %1013 = vmatprep.subr.bf16.mxu0 0
    %1014 = vmatpush1.bf16.msra.mxu0 0
    %1015 = vmatprep.mubr.bf16.mxu0 0
    %1016 = vmatmul.mubr.bf16.gmra.mrb[0].mxu0 %v981
    %v1017 = vpop.f32.mrb[0].mxu0
    %v1018 = vadd.f32 0.0, %v1017
    %v1019 = vpop.f32.mrb[0].mxu0
    %v1020 = vpop.f32.mrb[0].mxu0
    %v1021 = vadd.f32 0.0, %v1020
    %v1022 = vpop.f32.mrb[0].mxu0
    %1023 = vdwg.mxu0
    %v1024 = vpack.c.bf16 %v1021, %v1018
    %1026 = vrot.lane.b32.xlu0 %v1024, 32
    %v1027 = vpop.permute.xlu0 %1026
    %1029 = vst.msk [vmem:[#allocation3 + $0x10] sm:$0xff] %vm516, %v1027
    %v1030 = vld [vmem:[#allocation2 + $0x30] sm:$0xff]
    %v1031 = vld [vmem:[#allocation2 + $0x38] sm:$0xff]
    %1033 = vrot.lane.b32.xlu0 %v1030, 64
    %v1034 = vpop.permute.xlu0 %1033
    %v1036 = vsel %vm264, %v1030, 0
    %v1039 = vsel %vm264, %v1034, 0
    %1041 = vmatprep.subr.bf16.mxu0 0
    %1042 = vmatpush1.bf16.xpose.msra.mxu0 %v1039
    %1043 = vmatprep.subr.bf16.mxu0 0
    %1044 = vmatpush1.bf16.xpose.msra.mxu0 0
    %1045 = vmatprep.subr.bf16.mxu0 0
    %1046 = vmatpush1.bf16.xpose.msra.mxu0 0
    %1047 = vmatprep.subr.bf16.mxu0 0
    %1048 = vmatpush1.bf16.xpose.msra.mxu0 0
    %1049 = vmatprep.subr.bf16.mxu0 0
    %1050 = vmatpush1.bf16.xpose.msra.mxu0 0
    %1051 = vmatprep.subr.bf16.mxu0 0
    %1052 = vmatpush1.bf16.xpose.msra.mxu0 0
    %1053 = vmatprep.subr.bf16.mxu0 0
    %1054 = vmatpush1.bf16.xpose.msra.mxu0 0
    %1055 = vmatprep.subr.bf16.mxu0 0
    %1056 = vmatpush1.bf16.xpose.msra.mxu0 0
    %1057 = vmatprep.subr.bf16.mxu0 0
    %1058 = vmatpush1.bf16.xpose.msra.mxu0 0
    %1059 = vmatprep.subr.bf16.mxu0 0
    %1060 = vmatpush1.bf16.xpose.msra.mxu0 0
    %1061 = vmatprep.subr.bf16.mxu0 0
    %1062 = vmatpush1.bf16.xpose.msra.mxu0 0
    %1063 = vmatprep.subr.bf16.mxu0 0
    %1064 = vmatpush1.bf16.xpose.msra.mxu0 0
    %1065 = vmatprep.subr.bf16.mxu0 0
    %1066 = vmatpush1.bf16.xpose.msra.mxu0 0
    %1067 = vmatprep.subr.bf16.mxu0 0
    %1068 = vmatpush1.bf16.xpose.msra.mxu0 0
    %1069 = vmatprep.subr.bf16.mxu0 0
    %1070 = vmatpush1.bf16.xpose.msra.mxu0 0
    %1071 = vmatprep.subr.bf16.mxu0 0
    %1072 = vmatpush1.bf16.xpose.msra.mxu0 0
    %1073 = vmatprep.mubr.bf16.mxu0 0
    %1074 = vmatmul.mubr.bf16.gmra.mrb[0].mxu0 %v1036
    %v1075 = vpop.f32.mrb[0].mxu0
    %v1076 = vadd.f32 0.0, %v1075
    %v1077 = vpop.f32.mrb[0].mxu0
    %v1078 = vpop.f32.mrb[0].mxu0
    %v1079 = vadd.f32 0.0, %v1078
    %v1080 = vpop.f32.mrb[0].mxu0
    %1081 = vdwg.mxu0
    %v1082 = vmul.f32 %v1076, 0.17675781
    %v1083 = vmul.f32 %v1079, 0.17675781
    %v1084 = vsel %vm314, %v1082, -inf
    %1085 = vmax.xlane.f32.xlu0 %v1084
    %v1086 = vpop.xlane.xlu0 %1085
    %v1087 = vsel %vm314, %v1083, -inf
    %1088 = vmax.xlane.f32.xlu0 %v1087
    %v1089 = vpop.xlane.xlu0 %1088
    %v1090 = vsub.f32 %v1082, %v1086
    %v1091 = vsub.f32 %v1083, %v1089
    %v1092 = vmul.f32 %v1090, 1.442695
    %v1093 = vpow.pop %v1092
    %v1094 = vmul.f32 %v1091, 1.442695
    %v1095 = vpow.pop %v1094
    %v1096 = vsel %vm314, %v1093, 0.0
    %1097 = vadd.xlane.f32.xlu0 %v1096
    %v1098 = vpop.xlane.xlu0 %1097
    %v1099 = vsel %vm314, %v1095, 0.0
    %1100 = vadd.xlane.f32.xlu0 %v1099
    %v1101 = vpop.xlane.xlu0 %1100
    %v1102 = vrcp.pop %v1098
    %v1103 = vrcp.pop %v1101
    %v1104 = vmul.f32 %v1093, %v1102
    %v1105 = vmul.f32 %v1095, %v1103
    %v1106 = vpack.c.bf16 %v1105, %v1104
    %v1108 = vsel %vm314, %v1106, 0
    %1110 = vmatprep.subr.bf16.mxu0 0
    %1111 = vmatpush1.bf16.msra.mxu0 %v1031
    %1112 = vmatprep.subr.bf16.mxu0 0
    %1113 = vmatpush1.bf16.msra.mxu0 0
    %1114 = vmatprep.subr.bf16.mxu0 0
    %1115 = vmatpush1.bf16.msra.mxu0 0
    %1116 = vmatprep.subr.bf16.mxu0 0
    %1117 = vmatpush1.bf16.msra.mxu0 0
    %1118 = vmatprep.subr.bf16.mxu0 0
    %1119 = vmatpush1.bf16.msra.mxu0 0
    %1120 = vmatprep.subr.bf16.mxu0 0
    %1121 = vmatpush1.bf16.msra.mxu0 0
    %1122 = vmatprep.subr.bf16.mxu0 0
    %1123 = vmatpush1.bf16.msra.mxu0 0
    %1124 = vmatprep.subr.bf16.mxu0 0
    %1125 = vmatpush1.bf16.msra.mxu0 0
    %1126 = vmatprep.subr.bf16.mxu0 0
    %1127 = vmatpush1.bf16.msra.mxu0 0
    %1128 = vmatprep.subr.bf16.mxu0 0
    %1129 = vmatpush1.bf16.msra.mxu0 0
    %1130 = vmatprep.subr.bf16.mxu0 0
    %1131 = vmatpush1.bf16.msra.mxu0 0
    %1132 = vmatprep.subr.bf16.mxu0 0
    %1133 = vmatpush1.bf16.msra.mxu0 0
    %1134 = vmatprep.subr.bf16.mxu0 0
    %1135 = vmatpush1.bf16.msra.mxu0 0
    %1136 = vmatprep.subr.bf16.mxu0 0
    %1137 = vmatpush1.bf16.msra.mxu0 0
    %1138 = vmatprep.subr.bf16.mxu0 0
    %1139 = vmatpush1.bf16.msra.mxu0 0
    %1140 = vmatprep.subr.bf16.mxu0 0
    %1141 = vmatpush1.bf16.msra.mxu0 0
    %1142 = vmatprep.mubr.bf16.mxu0 0
    %1143 = vmatmul.mubr.bf16.gmra.mrb[0].mxu0 %v1108
    %v1144 = vpop.f32.mrb[0].mxu0
    %v1145 = vadd.f32 0.0, %v1144
    %v1146 = vpop.f32.mrb[0].mxu0
    %v1147 = vpop.f32.mrb[0].mxu0
    %v1148 = vadd.f32 0.0, %v1147
    %v1149 = vpop.f32.mrb[0].mxu0
    %1150 = vdwg.mxu0
    %v1151 = vpack.c.bf16 %v1148, %v1145
    %1152 = vst.msk [vmem:[#allocation3 + $0x18] sm:$0xff] %vm264, %v1151
    %v1153 = vld [vmem:[#allocation2 + $0x30] sm:$0xff]
    %v1154 = vld [vmem:[#allocation2 + $0x38] sm:$0xff]
    %1156 = vrot.lane.b32.xlu0 %v1153, 96
    %v1157 = vpop.permute.xlu0 %1156
    %1158 = vrot.lane.b32.xlu0 %v1153, 32
    %v1159 = vpop.permute.xlu0 %1158
    %v1161 = vsel %vm264, %v1157, 0
    %v1164 = vsel %vm264, %v1159, 0
    %1166 = vmatprep.subr.bf16.mxu0 0
    %1167 = vmatpush1.bf16.xpose.msra.mxu0 %v1164
    %1168 = vmatprep.subr.bf16.mxu0 0
    %1169 = vmatpush1.bf16.xpose.msra.mxu0 0
    %1170 = vmatprep.subr.bf16.mxu0 0
    %1171 = vmatpush1.bf16.xpose.msra.mxu0 0
    %1172 = vmatprep.subr.bf16.mxu0 0
    %1173 = vmatpush1.bf16.xpose.msra.mxu0 0
    %1174 = vmatprep.subr.bf16.mxu0 0
    %1175 = vmatpush1.bf16.xpose.msra.mxu0 0
    %1176 = vmatprep.subr.bf16.mxu0 0
    %1177 = vmatpush1.bf16.xpose.msra.mxu0 0
    %1178 = vmatprep.subr.bf16.mxu0 0
    %1179 = vmatpush1.bf16.xpose.msra.mxu0 0
    %1180 = vmatprep.subr.bf16.mxu0 0
    %1181 = vmatpush1.bf16.xpose.msra.mxu0 0
    %1182 = vmatprep.subr.bf16.mxu0 0
    %1183 = vmatpush1.bf16.xpose.msra.mxu0 0
    %1184 = vmatprep.subr.bf16.mxu0 0
    %1185 = vmatpush1.bf16.xpose.msra.mxu0 0
    %1186 = vmatprep.subr.bf16.mxu0 0
    %1187 = vmatpush1.bf16.xpose.msra.mxu0 0
    %1188 = vmatprep.subr.bf16.mxu0 0
    %1189 = vmatpush1.bf16.xpose.msra.mxu0 0
    %1190 = vmatprep.subr.bf16.mxu0 0
    %1191 = vmatpush1.bf16.xpose.msra.mxu0 0
    %1192 = vmatprep.subr.bf16.mxu0 0
    %1193 = vmatpush1.bf16.xpose.msra.mxu0 0
    %1194 = vmatprep.subr.bf16.mxu0 0
    %1195 = vmatpush1.bf16.xpose.msra.mxu0 0
    %1196 = vmatprep.subr.bf16.mxu0 0
    %1197 = vmatpush1.bf16.xpose.msra.mxu0 0
    %1198 = vmatprep.mubr.bf16.mxu0 0
    %1199 = vmatmul.mubr.bf16.gmra.mrb[0].mxu0 %v1161
    %v1200 = vpop.f32.mrb[0].mxu0
    %v1201 = vadd.f32 0.0, %v1200
    %v1202 = vpop.f32.mrb[0].mxu0
    %v1203 = vpop.f32.mrb[0].mxu0
    %v1204 = vadd.f32 0.0, %v1203
    %v1205 = vpop.f32.mrb[0].mxu0
    %1206 = vdwg.mxu0
    %v1207 = vmul.f32 %v1201, 0.17675781
    %v1208 = vmul.f32 %v1204, 0.17675781
    %v1209 = vsel %vm314, %v1207, -inf
    %1210 = vmax.xlane.f32.xlu0 %v1209
    %v1211 = vpop.xlane.xlu0 %1210
    %v1212 = vsel %vm314, %v1208, -inf
    %1213 = vmax.xlane.f32.xlu0 %v1212
    %v1214 = vpop.xlane.xlu0 %1213
    %v1215 = vsub.f32 %v1207, %v1211
    %v1216 = vsub.f32 %v1208, %v1214
    %v1217 = vmul.f32 %v1215, 1.442695
    %v1218 = vpow.pop %v1217
    %v1219 = vmul.f32 %v1216, 1.442695
    %v1220 = vpow.pop %v1219
    %v1221 = vsel %vm314, %v1218, 0.0
    %1222 = vadd.xlane.f32.xlu0 %v1221
    %v1223 = vpop.xlane.xlu0 %1222
    %v1224 = vsel %vm314, %v1220, 0.0
    %1225 = vadd.xlane.f32.xlu0 %v1224
    %v1226 = vpop.xlane.xlu0 %1225
    %v1227 = vrcp.pop %v1223
    %v1228 = vrcp.pop %v1226
    %v1229 = vmul.f32 %v1218, %v1227
    %v1230 = vmul.f32 %v1220, %v1228
    %v1231 = vpack.c.bf16 %v1230, %v1229
    %1233 = vrot.lane.b32.xlu0 %v1154, 96
    %v1234 = vpop.permute.xlu0 %1233
    %v1237 = vsel %vm314, %v1231, 0
    %1239 = vmatprep.subr.bf16.mxu0 0
    %1240 = vmatpush1.bf16.msra.mxu0 %v1234
    %1241 = vmatprep.subr.bf16.mxu0 0
    %1242 = vmatpush1.bf16.msra.mxu0 0
    %1243 = vmatprep.subr.bf16.mxu0 0
    %1244 = vmatpush1.bf16.msra.mxu0 0
    %1245 = vmatprep.subr.bf16.mxu0 0
    %1246 = vmatpush1.bf16.msra.mxu0 0
    %1247 = vmatprep.subr.bf16.mxu0 0
    %1248 = vmatpush1.bf16.msra.mxu0 0
    %1249 = vmatprep.subr.bf16.mxu0 0
    %1250 = vmatpush1.bf16.msra.mxu0 0
    %1251 = vmatprep.subr.bf16.mxu0 0
    %1252 = vmatpush1.bf16.msra.mxu0 0
    %1253 = vmatprep.subr.bf16.mxu0 0
    %1254 = vmatpush1.bf16.msra.mxu0 0
    %1255 = vmatprep.subr.bf16.mxu0 0
    %1256 = vmatpush1.bf16.msra.mxu0 0
    %1257 = vmatprep.subr.bf16.mxu0 0
    %1258 = vmatpush1.bf16.msra.mxu0 0
    %1259 = vmatprep.subr.bf16.mxu0 0
    %1260 = vmatpush1.bf16.msra.mxu0 0
    %1261 = vmatprep.subr.bf16.mxu0 0
    %1262 = vmatpush1.bf16.msra.mxu0 0
    %1263 = vmatprep.subr.bf16.mxu0 0
    %1264 = vmatpush1.bf16.msra.mxu0 0
    %1265 = vmatprep.subr.bf16.mxu0 0
    %1266 = vmatpush1.bf16.msra.mxu0 0
    %1267 = vmatprep.subr.bf16.mxu0 0
    %1268 = vmatpush1.bf16.msra.mxu0 0
    %1269 = vmatprep.subr.bf16.mxu0 0
    %1270 = vmatpush1.bf16.msra.mxu0 0
    %1271 = vmatprep.mubr.bf16.mxu0 0
    %1272 = vmatmul.mubr.bf16.gmra.mrb[0].mxu0 %v1237
    %v1273 = vpop.f32.mrb[0].mxu0
    %v1274 = vadd.f32 0.0, %v1273
    %v1275 = vpop.f32.mrb[0].mxu0
    %v1276 = vpop.f32.mrb[0].mxu0
    %v1277 = vadd.f32 0.0, %v1276
    %v1278 = vpop.f32.mrb[0].mxu0
    %1279 = vdwg.mxu0
    %v1280 = vpack.c.bf16 %v1277, %v1274
    %1282 = vrot.lane.b32.xlu0 %v1280, 32
    %v1283 = vpop.permute.xlu0 %1282
    %1285 = vst.msk [vmem:[#allocation3 + $0x18] sm:$0xff] %vm516, %v1283
    %v1286 = vld [vmem:[#allocation3] sm:$0xff]
    %v1287 = vld [vmem:[#allocation3 + $0x8] sm:$0xff]
    %v1288 = vld [vmem:[#allocation3 + $0x10] sm:$0xff]
    %v1289 = vld [vmem:[#allocation3 + $0x18] sm:$0xff]
    %v1290 = vld [vmem:[#allocation9] sm:$0xf]
    %v1291 = vld [vmem:[#allocation9 + $0x4] sm:$0xf]
    %v1292 = vld [vmem:[#allocation9 + $0x8] sm:$0xf]
    %v1293 = vld [vmem:[#allocation9 + $0xc] sm:$0xf]
    %v1294 = vld [vmem:[#allocation9 + $0x10] sm:$0xf]
    %v1295 = vld [vmem:[#allocation9 + $0x14] sm:$0xf]
    %v1296 = vld [vmem:[#allocation9 + $0x18] sm:$0xf]
    %v1297 = vld [vmem:[#allocation9 + $0x1c] sm:$0xf]
    %v1306 = vunpack.c.l.b16 %v1290
    %v1307 = vunpack.c.l.b16 %v1291
    %v1308 = vunpack.c.l.b16 %v1292
    %v1309 = vunpack.c.l.b16 %v1293
    %v1310 = vunpack.c.l.b16 %v1294
    %v1311 = vunpack.c.l.b16 %v1295
    %v1312 = vunpack.c.l.b16 %v1296
    %v1313 = vunpack.c.l.b16 %v1297
    %v1314 = vpack.c.b16 %v1307, %v1306
    %v1315 = vpack.c.b16 %v1309, %v1308
    %v1316 = vpack.c.b16 %v1311, %v1310
    %v1317 = vpack.c.b16 %v1313, %v1312
    %v1323 = vsel %vm157, %v1286, 0
    %v1326 = vsel %vm157, %v1287, 0
    %v1329 = vsel %vm157, %v1288, 0
    %v1332 = vsel %vm157, %v1289, 0
    %1334 = vmatprep.subr.bf16.mxu0 0
    %1335 = vmatpush1.bf16.msra.mxu0 %v1314
    %1336 = vmatprep.subr.bf16.mxu0 0
    %1337 = vmatpush1.bf16.msra.mxu0 %v1315
    %1338 = vmatprep.subr.bf16.mxu0 0
    %1339 = vmatpush1.bf16.msra.mxu0 %v1316
    %1340 = vmatprep.subr.bf16.mxu0 0
    %1341 = vmatpush1.bf16.msra.mxu0 %v1317
    %1342 = vmatprep.subr.bf16.mxu0 0
    %1343 = vmatpush1.bf16.msra.mxu0 0
    %1344 = vmatprep.subr.bf16.mxu0 0
    %1345 = vmatpush1.bf16.msra.mxu0 0
    %1346 = vmatprep.subr.bf16.mxu0 0
    %1347 = vmatpush1.bf16.msra.mxu0 0
    %1348 = vmatprep.subr.bf16.mxu0 0
    %1349 = vmatpush1.bf16.msra.mxu0 0
    %1350 = vmatprep.subr.bf16.mxu0 0
    %1351 = vmatpush1.bf16.msra.mxu0 0
    %1352 = vmatprep.subr.bf16.mxu0 0
    %1353 = vmatpush1.bf16.msra.mxu0 0
    %1354 = vmatprep.subr.bf16.mxu0 0
    %1355 = vmatpush1.bf16.msra.mxu0 0
    %1356 = vmatprep.subr.bf16.mxu0 0
    %1357 = vmatpush1.bf16.msra.mxu0 0
    %1358 = vmatprep.subr.bf16.mxu0 0
    %1359 = vmatpush1.bf16.msra.mxu0 0
    %1360 = vmatprep.subr.bf16.mxu0 0
    %1361 = vmatpush1.bf16.msra.mxu0 0
    %1362 = vmatprep.subr.bf16.mxu0 0
    %1363 = vmatpush1.bf16.msra.mxu0 0
    %1364 = vmatprep.subr.bf16.mxu0 0
    %1365 = vmatpush1.bf16.msra.mxu0 0
    %1366 = vmatprep.mubr.bf16.mxu0 0
    %1367 = vmatmul.mubr.bf16.gmra.mrb[0].mxu0 %v1323
    %v1368 = vpop.f32.mrb[0].mxu0
    %v1369 = vadd.f32 0.0, %v1368
    %v1370 = vpop.f32.mrb[0].mxu0
    %v1371 = vpop.f32.mrb[0].mxu0
    %v1372 = vadd.f32 0.0, %v1371
    %v1373 = vpop.f32.mrb[0].mxu0
    %1374 = vmatprep.mubr.bf16.mxu0 0
    %1375 = vmatmul.mubr.bf16.gmra.mrb[0].mxu0 %v1326
    %v1376 = vpop.f32.mrb[0].mxu0
    %v1377 = vadd.f32 0.0, %v1376
    %v1378 = vpop.f32.mrb[0].mxu0
    %v1379 = vpop.f32.mrb[0].mxu0
    %v1380 = vadd.f32 0.0, %v1379
    %v1381 = vpop.f32.mrb[0].mxu0
    %1382 = vmatprep.mubr.bf16.mxu0 0
    %1383 = vmatmul.mubr.bf16.gmra.mrb[0].mxu0 %v1329
    %v1384 = vpop.f32.mrb[0].mxu0
    %v1385 = vadd.f32 0.0, %v1384
    %v1386 = vpop.f32.mrb[0].mxu0
    %v1387 = vpop.f32.mrb[0].mxu0
    %v1388 = vadd.f32 0.0, %v1387
    %v1389 = vpop.f32.mrb[0].mxu0
    %1390 = vmatprep.mubr.bf16.mxu0 0
    %1391 = vmatmul.mubr.bf16.gmra.mrb[0].mxu0 %v1332
    %v1392 = vpop.f32.mrb[0].mxu0
    %v1393 = vadd.f32 0.0, %v1392
    %v1394 = vpop.f32.mrb[0].mxu0
    %v1395 = vpop.f32.mrb[0].mxu0
    %v1396 = vadd.f32 0.0, %v1395
    %v1397 = vpop.f32.mrb[0].mxu0
    %1398 = vdwg.mxu0
    %v1399 = vpack.c.bf16 %v1372, %v1369
    %v1400 = vpack.c.bf16 %v1380, %v1377
    %v1401 = vpack.c.bf16 %v1388, %v1385
    %v1402 = vpack.c.bf16 %v1396, %v1393
    %v1407 = vunpack.c.l.b16 %v1399
    %v1408 = vunpack.c.h.b16 %v1399
    %v1409 = vunpack.c.l.b16 %v1400
    %v1410 = vunpack.c.h.b16 %v1400
    %v1411 = vunpack.c.l.b16 %v1401
    %v1412 = vunpack.c.h.b16 %v1401
    %v1413 = vunpack.c.l.b16 %v1402
    %v1414 = vunpack.c.h.b16 %v1402
    %v1415 = vpack.c.b16 %v1407, %v1407
    %v1416 = vpack.c.b16 %v1408, %v1408
    %v1417 = vpack.c.b16 %v1409, %v1409
    %v1418 = vpack.c.b16 %v1410, %v1410
    %v1419 = vpack.c.b16 %v1411, %v1411
    %v1420 = vpack.c.b16 %v1412, %v1412
    %v1421 = vpack.c.b16 %v1413, %v1413
    %v1422 = vpack.c.b16 %v1414, %v1414
    %1431 = vst [vmem:[#allocation10] sm:$0xf] %v1415
    %1432 = vst [vmem:[#allocation10 + $0x4] sm:$0xf] %v1416
    %1433 = vst [vmem:[#allocation10 + $0x8] sm:$0xf] %v1417
    %1434 = vst [vmem:[#allocation10 + $0xc] sm:$0xf] %v1418
    %1435 = vst [vmem:[#allocation10 + $0x10] sm:$0xf] %v1419
    %1436 = vst [vmem:[#allocation10 + $0x14] sm:$0xf] %v1420
    %1437 = vst [vmem:[#allocation10 + $0x18] sm:$0xf] %v1421
    %1438 = vst [vmem:[#allocation10 + $0x1c] sm:$0xf] %v1422
    // Predicated region
    $region30: #{tpu_custom_call.1} parent=1 // pred_check
      _
    $region31: #{tpu_custom_call.1} parent=1 // pred_check_branch
      %1440 = sbr.rel (0) target = $region33
    $region32: #{tpu_custom_call.1} parent=1 // pred_region
      %s1442 = ssub.s32 512, 512
      %1443 = vsyncadd [#allocation6], %s1442
      %s1444 = sshll.u32 [#allocation10], 4
      %s1445 = int_to_ptr.vmem [resolvable:$true] %s1444
      %1450 = dma.vmem_to_hbm [thread:$0]  %s1445, 512, %s4, [#allocation6], 64, 64, 4
    $region33: #{tpu_custom_call.1} parent=1 // pred_fallthru
      _
    // Predicated region
    $region34: #{tpu_custom_call.1} parent=1 // pred_check
      _
    $region35: #{tpu_custom_call.1} parent=1 // pred_check_branch
      %1452 = sbr.rel (0) target = $region37
    $region36: #{tpu_custom_call.1} parent=1 // pred_region
      %1453 = dma.done [#allocation6], 512
    $region37: #{tpu_custom_call.1} parent=1 // pred_fallthru
      _
    %1454 = vsyncpa [#allocation5], 1
    %1455 = vsyncpa [#allocation8], 1
    %1456 = vsyncpa [#allocation6], 1

</llo_original>
